<compile_context>
chip_gen: v5e
topology: v5e:2x2
jax: 0.10.0
libtpu: 0.0.40
codegen_flags: <defaults>
</compile_context>

<pallas_src>
import functools

import jax
import jax.numpy as jnp
import numpy as np
from jax.experimental import pallas as pl
from jax.experimental.pallas import tpu as pltpu


def _round_up(x, m):
    return ((x + m - 1) // m) * m


def decoder_lstm_kernel(x_ref, h0_ref, c0_ref, wih_ref, whh_ref, b_ref,
                        wout_ref, bout_ref,
                        logits_ref, h_out_ref, c_out_ref,
                        hbuf_ref, *, seq_len, mask_tail):
    """One grid step == (one time chunk) x (one vocab tile).

    x_ref    : (Tc*Bp, Dx)   embedded tokens, time-major rows (t-major, b-minor)
    h0/c0    : (Bp, Hp)      initial LSTM state (consumed only at chunk 0)
    wih_ref  : (Dx, 4*Hp)    LSTM input weights, transposed, gate-padded to Hp lanes
    whh_ref  : (Hp, 4*Hp)    LSTM recurrent weights, transposed, gate-padded
    b_ref    : (1, 4*Hp)     b_ih + b_hh, gate-padded
    wout_ref : (Hp, Tn)      output-projection tile (vocab-tiled, lane-dense)
    bout_ref : (1, Tn)
    logits   : (Tc, Bp, Tn)  lane-dense output block for this (chunk, vocab tile)
    h_out/c_out : (Bp, Hp)   resident output blocks == recurrent carry
    hbuf_ref : VMEM (Tc, Bp, Hp) chunk hidden states, reused across vocab tiles
    """
    ti = pl.program_id(0)
    vi = pl.program_id(1)

    _, Dx = x_ref.shape
    Bp, Hp = h_out_ref.shape
    Tc = hbuf_ref.shape[0]
    Tn = logits_ref.shape[-1]

    # Initialize the resident carry once, from the provided initial state.
    @pl.when(jnp.logical_and(ti == 0, vi == 0))
    def _init():
        h_out_ref[...] = h0_ref[...]
        c_out_ref[...] = c0_ref[...]

    # Phases 1 + 2 run once per time chunk (first vocab tile only).
    @pl.when(vi == 0)
    def _recurrence():
        # Phase 1 (time-parallel): input gates for the whole chunk, kept in vregs.
        gx = (jnp.dot(x_ref[...], wih_ref[...], preferred_element_type=jnp.float32)
              + b_ref[...])                                           # (Tc*Bp, 4*Hp)

        # Phase 2 (serial): only h @ W_hh^T is on the recurrent critical path.
        whh = whh_ref[...]
        h = h_out_ref[...]
        c = c_out_ref[...]
        for t in range(Tc):                                           # static unroll
            g_all = (gx[t * Bp:(t + 1) * Bp, :]
                     + jnp.dot(h, whh, preferred_element_type=jnp.float32))
            # Gate slices are lane-aligned (Hp % 128 == 0) -> zero-cost views.
            i_g = jax.nn.sigmoid(g_all[:, 0 * Hp:1 * Hp])
            f_g = jax.nn.sigmoid(g_all[:, 1 * Hp:2 * Hp])
            g_g = jnp.tanh(g_all[:, 2 * Hp:3 * Hp])
            o_g = jax.nn.sigmoid(g_all[:, 3 * Hp:4 * Hp])
            c_new = f_g * c + i_g * g_g
            h_new = o_g * jnp.tanh(c_new)
            if mask_tail:
                valid = (ti * Tc + t) < seq_len
                h = jnp.where(valid, h_new, h)
                c = jnp.where(valid, c_new, c)
            else:
                h, c = h_new, c_new
            hbuf_ref[t] = h                                           # aligned (Bp,Hp) store
        h_out_ref[...] = h
        c_out_ref[...] = c

    # Phase 3 (time-parallel): output projection for this vocab tile, lane-dense.
    hs = hbuf_ref[...].reshape(Tc * Bp, Hp)                           # free view (Bp % 8 == 0)
    out = (jnp.dot(hs, wout_ref[...], preferred_element_type=jnp.float32)
           + bout_ref[...])
    logits_ref[...] = out.reshape(Tc, Bp, Tn)                         # free view


def decoder_forward(params, input_seqs, last_hidden=None, *,
                    time_chunk=8, vocab_tile=2048):
    """Mirrors Decoder.forward (eval mode).

    input_seqs : (B, T) int32 token ids (batch_first)
    last_hidden: optional ((1,B,H), (1,B,H)) initial LSTM state; None -> zeros
    returns    : logits (B, T, V), (h_n (1,B,H), c_n (1,B,H))
    """
    # Time-major embedding gather directly (no separate (B,T,Dx)->(T,B,Dx) HBM pass).
    # TODO(synk): fuse the gather into the kernel via num_scalar_prefetch + pl.Element.
    emb_tm = params["embedding"][input_seqs.T].astype(jnp.float32)    # (T, B, Dx)
    T, B, Dx = emb_tm.shape
    H = params["w_hh"].shape[1]
    V = params["w_out"].shape[0]

    # Hardware-aligned padded sizes.
    Bp = _round_up(B, 8)            # f32 sublane count
    Hp = _round_up(H, 128)          # lane-aligned gates
    Vp = _round_up(V, 128)          # lane-dense logits

    # Time chunk: multiple of 8 (so reshapes stay free views), capped unroll,
    # indivisible T is padded up and masked (no Tc=1 degradation).
    Tc = min(_round_up(max(1, min(time_chunk, T)), 8), 32)
    Tp = _round_up(T, Tc)
    nT = Tp // Tc
    mask_tail = (Tp != T)

    # Vocab tile: multiple of 128 dividing Vp.
    Tn = min(_round_up(min(vocab_tile, Vp), 128), Vp)
    while Vp % Tn:
        Tn -= 128
    nV = Vp // Tn

    # ---- pad / lay out inputs ------------------------------------------------
    x = jnp.zeros((Tp, Bp, Dx), jnp.float32).at[:T, :B, :].set(emb_tm)
    x2d = x.reshape(Tp * Bp, Dx)                                      # (Tp*Bp, Dx)

    h0_p = jnp.zeros((Bp, Hp), jnp.float32)
    c0_p = jnp.zeros((Bp, Hp), jnp.float32)
    if last_hidden is not None:
        h0_p = h0_p.at[:B, :H].set(last_hidden[0][0].astype(jnp.float32))
        c0_p = c0_p.at[:B, :H].set(last_hidden[1][0].astype(jnp.float32))

    # Gate-padded weight layout: gate k occupies lanes [k*Hp, k*Hp+H); padding lanes are
    # zero (and W_hh rows >= H are zero), so padded hidden lanes stay exactly 0.
    b_full = (params["b_ih"] + params["b_hh"]).astype(jnp.float32)
    wih_p = jnp.zeros((Dx, 4 * Hp), jnp.float32)
    whh_p = jnp.zeros((Hp, 4 * Hp), jnp.float32)
    b_p = jnp.zeros((1, 4 * Hp), jnp.float32)
    for k in range(4):
        wih_p = wih_p.at[:, k * Hp:k * Hp + H].set(
            params["w_ih"][k * H:(k + 1) * H, :].T.astype(jnp.float32))
        whh_p = whh_p.at[:H, k * Hp:k * Hp + H].set(
            params["w_hh"][k * H:(k + 1) * H, :].T.astype(jnp.float32))
        b_p = b_p.at[0, k * Hp:k * Hp + H].set(b_full[k * H:(k + 1) * H])

    wout_p = jnp.zeros((Hp, Vp), jnp.float32).at[:H, :V].set(
        params["w_out"].T.astype(jnp.float32))
    bout_p = jnp.zeros((1, Vp), jnp.float32).at[0, :V].set(
        params["b_out"].astype(jnp.float32))

    kernel = functools.partial(decoder_lstm_kernel, seq_len=T, mask_tail=mask_tail)

    logits_tm, h_n, c_n = pl.pallas_call(
        kernel,
        out_shape=(jax.ShapeDtypeStruct((Tp, Bp, Vp), jnp.float32),
                   jax.ShapeDtypeStruct((Bp, Hp), jnp.float32),
                   jax.ShapeDtypeStruct((Bp, Hp), jnp.float32)),
        grid_spec=pltpu.PrefetchScalarGridSpec(
            num_scalar_prefetch=0,
            grid=(nT, nV),
            in_specs=[
                pl.BlockSpec((Tc * Bp, Dx), lambda t, v: (t, 0)),     # embedded chunk (2D)
                pl.BlockSpec((Bp, Hp), lambda t, v: (0, 0)),          # h0
                pl.BlockSpec((Bp, Hp), lambda t, v: (0, 0)),          # c0
                pl.BlockSpec((Dx, 4 * Hp), lambda t, v: (0, 0)),      # W_ih^T (gate-padded)
                pl.BlockSpec((Hp, 4 * Hp), lambda t, v: (0, 0)),      # W_hh^T (gate-padded)
                pl.BlockSpec((1, 4 * Hp), lambda t, v: (0, 0)),       # bias
                pl.BlockSpec((Hp, Tn), lambda t, v: (0, v)),          # W_out^T vocab tile
                pl.BlockSpec((1, Tn), lambda t, v: (0, v)),           # b_out vocab tile
            ],
            out_specs=[
                pl.BlockSpec((Tc, Bp, Tn), lambda t, v: (t, 0, v)),   # logits chunk x vtile
                pl.BlockSpec((Bp, Hp), lambda t, v: (0, 0)),          # h_n (resident carry)
                pl.BlockSpec((Bp, Hp), lambda t, v: (0, 0)),          # c_n (resident carry)
            ],
            scratch_shapes=[pltpu.VMEM((Tc, Bp, Hp), jnp.float32)],   # chunk hidden states
        ),
        compiler_params=pltpu.CompilerParams(
            dimension_semantics=("arbitrary", "arbitrary"),           # sequential recurrence
            vmem_limit_bytes=48 * 1024 * 1024,                        # safe on v5e/v6e/v7x
        ),
    )(x2d, h0_p, c0_p, wih_p, whh_p, b_p, wout_p, bout_p)

    # Slice padding off before the (small, sliced) batch-first transpose.
    logits = jnp.transpose(logits_tm[:T, :B, :V], (1, 0, 2))          # (B, T, V)
    h_n = h_n[:B, :H][None]
    c_n = c_n[:B, :H][None]
    return logits, (h_n, c_n)


def reference_forward(params, input_seqs, last_hidden=None):
    """Pure-JAX reference mirroring the PyTorch Decoder forward (eval mode)."""
    emb = params["embedding"][input_seqs].astype(jnp.float32)
    B, T, Dx = emb.shape
    H = params["w_hh"].shape[1]
    if last_hidden is None:
        h = jnp.zeros((B, H), jnp.float32)
        c = jnp.zeros((B, H), jnp.float32)
    else:
        h = last_hidden[0][0].astype(jnp.float32)
        c = last_hidden[1][0].astype(jnp.float32)

    w_ih, w_hh = params["w_ih"], params["w_hh"]
    b = params["b_ih"] + params["b_hh"]

    def step(carry, x_t):
        h, c = carry
        gates = x_t @ w_ih.T + h @ w_hh.T + b
        i, f, g, o = jnp.split(gates, 4, axis=-1)
        i, f, o = jax.nn.sigmoid(i), jax.nn.sigmoid(f), jax.nn.sigmoid(o)
        g = jnp.tanh(g)
        c = f * c + i * g
        h = o * jnp.tanh(c)
        return (h, c), h

    (h_n, c_n), hs = jax.lax.scan(step, (h, c), jnp.transpose(emb, (1, 0, 2)))
    lstm_out = jnp.transpose(hs, (1, 0, 2))
    logits = lstm_out @ params["w_out"].T + params["b_out"]
    return logits, (h_n[None], c_n[None])


if __name__ == "__main__":
    key = jax.random.PRNGKey(0)
    B, T = 2, 16
    word_dim, H, V = 16, 32, 64          # word_dim, lstm_hidden_dim, tgt_vocab_size

    ks = jax.random.split(key, 12)
    initrange = 0.5 / word_dim           # matches init_embedding()
    stdv_lstm = 1.0 / np.sqrt(H)         # PyTorch LSTM default init range
    stdv_lin = 1.0 / np.sqrt(H)          # PyTorch Linear(H, V) default init range

    params = dict(
        embedding=jax.random.uniform(ks[0], (V, word_dim), jnp.float32, -initrange, initrange),
        w_ih=jax.random.uniform(ks[1], (4 * H, word_dim), jnp.float32, -stdv_lstm, stdv_lstm),
        w_hh=jax.random.uniform(ks[2], (4 * H, H), jnp.float32, -stdv_lstm, stdv_lstm),
        b_ih=jax.random.uniform(ks[3], (4 * H,), jnp.float32, -stdv_lstm, stdv_lstm),
        b_hh=jax.random.uniform(ks[4], (4 * H,), jnp.float32, -stdv_lstm, stdv_lstm),
        w_out=jax.random.uniform(ks[5], (V, H), jnp.float32, -stdv_lin, stdv_lin),
        b_out=jax.random.uniform(ks[6], (V,), jnp.float32, -stdv_lin, stdv_lin),
    )

    input_seqs = jax.random.randint(ks[7], (B, T), 0, V)              # (B, T) token ids
    last_hidden = (jax.random.normal(ks[8], (1, B, H), jnp.float32),  # provided initial state
                   jax.random.normal(ks[9], (1, B, H), jnp.float32))

    # Case 1: explicit last_hidden (exercises cross-chunk carry + h0/c0 plumbing).
    logits, (h_n, c_n) = decoder_forward(params, input_seqs, last_hidden, time_chunk=8)
    logits = jax.block_until_ready(logits)
    h_n = jax.block_until_ready(h_n)
    c_n = jax.block_until_ready(c_n)
    ref_logits, (ref_h, ref_c) = reference_forward(params, input_seqs, last_hidden)
    np.testing.assert_allclose(np.asarray(logits), np.asarray(ref_logits), atol=2e-3, rtol=0)
    np.testing.assert_allclose(np.asarray(h_n), np.asarray(ref_h), atol=2e-3, rtol=0)
    np.testing.assert_allclose(np.asarray(c_n), np.asarray(ref_c), atol=2e-3, rtol=0)

    # Case 2: default call path (last_hidden=None -> zero initial state).
    logits0, (h0n, c0n) = decoder_forward(params, input_seqs, None, time_chunk=8)
    logits0 = jax.block_until_ready(logits0)
    h0n = jax.block_until_ready(h0n)
    c0n = jax.block_until_ready(c0n)
    ref_logits0, (ref_h0, ref_c0) = reference_forward(params, input_seqs, None)
    np.testing.assert_allclose(np.asarray(logits0), np.asarray(ref_logits0), atol=2e-3, rtol=0)
    np.testing.assert_allclose(np.asarray(h0n), np.asarray(ref_h0), atol=2e-3, rtol=0)
    np.testing.assert_allclose(np.asarray(c0n), np.asarray(ref_c0), atol=2e-3, rtol=0)

    print("KERNEL_OK")
</pallas_src>

<mosaic_0001>
module attributes {stable_mosaic.version = 11 : i64} {
  func.func @decoder_lstm_kernel(%arg0: i32, %arg1: i32, %arg2: memref<64x16xf32, #tpu.memory_space<vmem>>, %arg3: memref<8x128xf32, #tpu.memory_space<vmem>>, %arg4: memref<8x128xf32, #tpu.memory_space<vmem>>, %arg5: memref<16x512xf32, #tpu.memory_space<vmem>>, %arg6: memref<128x512xf32, #tpu.memory_space<vmem>>, %arg7: memref<1x512xf32, #tpu.memory_space<vmem>>, %arg8: memref<128x128xf32, #tpu.memory_space<vmem>>, %arg9: memref<1x128xf32, #tpu.memory_space<vmem>>, %arg10: memref<8x8x128xf32, #tpu.memory_space<vmem>>, %arg11: memref<8x128xf32, #tpu.memory_space<vmem>>, %arg12: memref<8x128xf32, #tpu.memory_space<vmem>>, %arg13: memref<8x8x128xf32, #tpu.memory_space<vmem>>) attributes {dimension_semantics = [#tpu.dimension_semantics<arbitrary>, #tpu.dimension_semantics<arbitrary>], iteration_bounds = array<i64: 2, 1>, scalar_prefetch = 0 : i64, scratch_operands = 1 : i64, tpu.core_type = #tpu.core_type<tc>, window_params = [{transform_indices = @transform_0, window_bounds = array<i64: 64, 16>}, {pipeline_mode = #tpu.pipeline_mode<synchronous>, transform_indices = @transform_1, window_bounds = array<i64: 8, 128>}, {pipeline_mode = #tpu.pipeline_mode<synchronous>, transform_indices = @transform_2, window_bounds = array<i64: 8, 128>}, {pipeline_mode = #tpu.pipeline_mode<synchronous>, transform_indices = @transform_3, window_bounds = array<i64: 16, 512>}, {pipeline_mode = #tpu.pipeline_mode<synchronous>, transform_indices = @transform_4, window_bounds = array<i64: 128, 512>}, {pipeline_mode = #tpu.pipeline_mode<synchronous>, transform_indices = @transform_5, window_bounds = array<i64: 1, 512>}, {transform_indices = @transform_6, window_bounds = array<i64: 128, 128>}, {transform_indices = @transform_7, window_bounds = array<i64: 1, 128>}, {transform_indices = @transform_8, window_bounds = array<i64: 8, 8, 128>}, {pipeline_mode = #tpu.pipeline_mode<synchronous>, transform_indices = @transform_9, window_bounds = array<i64: 8, 128>}, {pipeline_mode = #tpu.pipeline_mode<synchronous>, transform_indices = @transform_10, window_bounds = array<i64: 8, 128>}]} {
    %c0_i32 = arith.constant 0 : i32
    %0 = arith.cmpi eq, %arg0, %c0_i32 : i32
    %c0_i32_0 = arith.constant 0 : i32
    %1 = arith.cmpi eq, %arg1, %c0_i32_0 : i32
    %2 = arith.andi %0, %1 : i1
    %3 = arith.extui %2 : i1 to i32
    %c0_i32_1 = arith.constant 0 : i32
    %4 = arith.cmpi ne, %3, %c0_i32_1 : i32
    scf.if %4 {
      %c0_13 = arith.constant 0 : index
      %c0_14 = arith.constant 0 : index
      %17 = vector.load %arg3[%c0_13, %c0_14] : memref<8x128xf32, #tpu.memory_space<vmem>>, vector<8x128xf32>
      %c0_15 = arith.constant 0 : index
      %c0_16 = arith.constant 0 : index
      %18 = vector.load %arg11[%c0_15, %c0_16] : memref<8x128xf32, #tpu.memory_space<vmem>>, vector<8x128xf32>
      tpu.vector_store %arg11[%c0_15, %c0_16], %17 {strides = array<i32>} : memref<8x128xf32, #tpu.memory_space<vmem>>, vector<8x128xf32>,
      %c0_17 = arith.constant 0 : index
      %c0_18 = arith.constant 0 : index
      %19 = vector.load %arg4[%c0_17, %c0_18] : memref<8x128xf32, #tpu.memory_space<vmem>>, vector<8x128xf32>
      %c0_19 = arith.constant 0 : index
      %c0_20 = arith.constant 0 : index
      %20 = vector.load %arg12[%c0_19, %c0_20] : memref<8x128xf32, #tpu.memory_space<vmem>>, vector<8x128xf32>
      tpu.vector_store %arg12[%c0_19, %c0_20], %19 {strides = array<i32>} : memref<8x128xf32, #tpu.memory_space<vmem>>, vector<8x128xf32>,
    } else {
    }
    %c0_i32_2 = arith.constant 0 : i32
    %5 = arith.cmpi eq, %arg1, %c0_i32_2 : i32
    %6 = arith.extui %5 : i1 to i32
    %c0_i32_3 = arith.constant 0 : i32
    %7 = arith.cmpi ne, %6, %c0_i32_3 : i32
    scf.if %7 {
      %c0_13 = arith.constant 0 : index
      %c0_14 = arith.constant 0 : index
      %17 = vector.load %arg2[%c0_13, %c0_14] : memref<64x16xf32, #tpu.memory_space<vmem>>, vector<64x16xf32>
      %c0_15 = arith.constant 0 : index
      %c0_16 = arith.constant 0 : index
      %18 = vector.load %arg5[%c0_15, %c0_16] : memref<16x512xf32, #tpu.memory_space<vmem>>, vector<16x512xf32>
      %cst_17 = arith.constant dense<0.000000e+00> : vector<64x512xf32>
      %19 = tpu.matmul %17, %18, %cst_17 {dimension_numbers = #tpu.dot_dimension_numbers<[1], [0], [0], [1], [0, 0, 1, 1], [], []>} : vector<64x16xf32>, vector<16x512xf32>, vector<64x512xf32> -> vector<64x512xf32>
      %c0_18 = arith.constant 0 : index
      %c0_19 = arith.constant 0 : index
      %20 = vector.load %arg7[%c0_18, %c0_19] : memref<1x512xf32, #tpu.memory_space<vmem>>, vector<1x512xf32>
      %21 = vector.broadcast %20 : vector<1x512xf32> to vector<64x512xf32>
      %22 = arith.addf %19, %21 : vector<64x512xf32>
      %c0_20 = arith.constant 0 : index
      %c0_21 = arith.constant 0 : index
      %23 = vector.load %arg6[%c0_20, %c0_21] : memref<128x512xf32, #tpu.memory_space<vmem>>, vector<128x512xf32>
      %c0_22 = arith.constant 0 : index
      %c0_23 = arith.constant 0 : index
      %24 = vector.load %arg11[%c0_22, %c0_23] : memref<8x128xf32, #tpu.memory_space<vmem>>, vector<8x128xf32>
      %c0_24 = arith.constant 0 : index
      %c0_25 = arith.constant 0 : index
      %25 = vector.load %arg12[%c0_24, %c0_25] : memref<8x128xf32, #tpu.memory_space<vmem>>, vector<8x128xf32>
      %26 = vector.extract_strided_slice %22 {offsets = [0, 0], sizes = [8, 512], strides = [1, 1]} : vector<64x512xf32> to vector<8x512xf32>
      %cst_26 = arith.constant dense<0.000000e+00> : vector<8x512xf32>
      %27 = tpu.matmul %24, %23, %cst_26 {dimension_numbers = #tpu.dot_dimension_numbers<[1], [0], [0], [1], [0, 0, 1, 1], [], []>} : vector<8x128xf32>, vector<128x512xf32>, vector<8x512xf32> -> vector<8x512xf32>
      %28 = arith.addf %26, %27 : vector<8x512xf32>
      %29 = vector.extract_strided_slice %28 {offsets = [0, 0], sizes = [8, 128], strides = [1, 1]} : vector<8x512xf32> to vector<8x128xf32>
      %30 = arith.negf %29 : vector<8x128xf32>
      %31 = math.exp %30 : vector<8x128xf32>
      %cst_27 = arith.constant 1.000000e+00 : f32
      %32 = vector.broadcast %cst_27 : f32 to vector<8x128xf32>
      %33 = arith.addf %32, %31 : vector<8x128xf32>
      %34 = arith.divf %32, %33 : vector<8x128xf32>
      %35 = vector.extract_strided_slice %28 {offsets = [0, 128], sizes = [8, 128], strides = [1, 1]} : vector<8x512xf32> to vector<8x128xf32>
      %36 = arith.negf %35 : vector<8x128xf32>
      %37 = math.exp %36 : vector<8x128xf32>
      %cst_28 = arith.constant 1.000000e+00 : f32
      %38 = vector.broadcast %cst_28 : f32 to vector<8x128xf32>
      %39 = arith.addf %38, %37 : vector<8x128xf32>
      %40 = arith.divf %38, %39 : vector<8x128xf32>
      %41 = vector.extract_strided_slice %28 {offsets = [0, 256], sizes = [8, 128], strides = [1, 1]} : vector<8x512xf32> to vector<8x128xf32>
      %42 = math.tanh %41 : vector<8x128xf32>
      %43 = vector.extract_strided_slice %28 {offsets = [0, 384], sizes = [8, 128], strides = [1, 1]} : vector<8x512xf32> to vector<8x128xf32>
      %44 = arith.negf %43 : vector<8x128xf32>
      %45 = math.exp %44 : vector<8x128xf32>
      %cst_29 = arith.constant 1.000000e+00 : f32
      %46 = vector.broadcast %cst_29 : f32 to vector<8x128xf32>
      %47 = arith.addf %46, %45 : vector<8x128xf32>
      %48 = arith.divf %46, %47 : vector<8x128xf32>
      %49 = arith.mulf %40, %25 : vector<8x128xf32>
      %50 = arith.mulf %34, %42 : vector<8x128xf32>
      %51 = arith.addf %49, %50 : vector<8x128xf32>
      %52 = math.tanh %51 : vector<8x128xf32>
      %53 = arith.mulf %48, %52 : vector<8x128xf32>
      %c0_30 = arith.constant 0 : index
      %c0_31 = arith.constant 0 : index
      %c0_32 = arith.constant 0 : index
      %54 = vector.load %arg13[%c0_30, %c0_31, %c0_32] : memref<8x8x128xf32, #tpu.memory_space<vmem>>, vector<1x8x128xf32>
      %55 = vector.shape_cast %54 : vector<1x8x128xf32> to vector<8x128xf32>
      %56 = vector.shape_cast %53 : vector<8x128xf32> to vector<1x8x128xf32>
      tpu.vector_store %arg13[%c0_30, %c0_31, %c0_32], %56 {strides = array<i32>} : memref<8x8x128xf32, #tpu.memory_space<vmem>>, vector<1x8x128xf32>,
      %57 = vector.extract_strided_slice %22 {offsets = [8, 0], sizes = [8, 512], strides = [1, 1]} : vector<64x512xf32> to vector<8x512xf32>
      %cst_33 = arith.constant dense<0.000000e+00> : vector<8x512xf32>
      %58 = tpu.matmul %53, %23, %cst_33 {dimension_numbers = #tpu.dot_dimension_numbers<[1], [0], [0], [1], [0, 0, 1, 1], [], []>} : vector<8x128xf32>, vector<128x512xf32>, vector<8x512xf32> -> vector<8x512xf32>
      %59 = arith.addf %57, %58 : vector<8x512xf32>
      %60 = vector.extract_strided_slice %59 {offsets = [0, 0], sizes = [8, 128], strides = [1, 1]} : vector<8x512xf32> to vector<8x128xf32>
      %61 = arith.negf %60 : vector<8x128xf32>
      %62 = math.exp %61 : vector<8x128xf32>
      %cst_34 = arith.constant 1.000000e+00 : f32
      %63 = vector.broadcast %cst_34 : f32 to vector<8x128xf32>
      %64 = arith.addf %63, %62 : vector<8x128xf32>
      %65 = arith.divf %63, %64 : vector<8x128xf32>
      %66 = vector.extract_strided_slice %59 {offsets = [0, 128], sizes = [8, 128], strides = [1, 1]} : vector<8x512xf32> to vector<8x128xf32>
      %67 = arith.negf %66 : vector<8x128xf32>
      %68 = math.exp %67 : vector<8x128xf32>
      %cst_35 = arith.constant 1.000000e+00 : f32
      %69 = vector.broadcast %cst_35 : f32 to vector<8x128xf32>
      %70 = arith.addf %69, %68 : vector<8x128xf32>
      %71 = arith.divf %69, %70 : vector<8x128xf32>
      %72 = vector.extract_strided_slice %59 {offsets = [0, 256], sizes = [8, 128], strides = [1, 1]} : vector<8x512xf32> to vector<8x128xf32>
      %73 = math.tanh %72 : vector<8x128xf32>
      %74 = vector.extract_strided_slice %59 {offsets = [0, 384], sizes = [8, 128], strides = [1, 1]} : vector<8x512xf32> to vector<8x128xf32>
      %75 = arith.negf %74 : vector<8x128xf32>
      %76 = math.exp %75 : vector<8x128xf32>
      %cst_36 = arith.constant 1.000000e+00 : f32
      %77 = vector.broadcast %cst_36 : f32 to vector<8x128xf32>
      %78 = arith.addf %77, %76 : vector<8x128xf32>
      %79 = arith.divf %77, %78 : vector<8x128xf32>
      %80 = arith.mulf %71, %51 : vector<8x128xf32>
      %81 = arith.mulf %65, %73 : vector<8x128xf32>
      %82 = arith.addf %80, %81 : vector<8x128xf32>
      %83 = math.tanh %82 : vector<8x128xf32>
      %84 = arith.mulf %79, %83 : vector<8x128xf32>
      %c1 = arith.constant 1 : index
      %c0_37 = arith.constant 0 : index
      %c0_38 = arith.constant 0 : index
      %85 = vector.load %arg13[%c1, %c0_37, %c0_38] : memref<8x8x128xf32, #tpu.memory_space<vmem>>, vector<1x8x128xf32>
      %86 = vector.shape_cast %85 : vector<1x8x128xf32> to vector<8x128xf32>
      %87 = vector.shape_cast %84 : vector<8x128xf32> to vector<1x8x128xf32>
      tpu.vector_store %arg13[%c1, %c0_37, %c0_38], %87 {strides = array<i32>} : memref<8x8x128xf32, #tpu.memory_space<vmem>>, vector<1x8x128xf32>,
      %88 = vector.extract_strided_slice %22 {offsets = [16, 0], sizes = [8, 512], strides = [1, 1]} : vector<64x512xf32> to vector<8x512xf32>
      %cst_39 = arith.constant dense<0.000000e+00> : vector<8x512xf32>
      %89 = tpu.matmul %84, %23, %cst_39 {dimension_numbers = #tpu.dot_dimension_numbers<[1], [0], [0], [1], [0, 0, 1, 1], [], []>} : vector<8x128xf32>, vector<128x512xf32>, vector<8x512xf32> -> vector<8x512xf32>
      %90 = arith.addf %88, %89 : vector<8x512xf32>
      %91 = vector.extract_strided_slice %90 {offsets = [0, 0], sizes = [8, 128], strides = [1, 1]} : vector<8x512xf32> to vector<8x128xf32>
      %92 = arith.negf %91 : vector<8x128xf32>
      %93 = math.exp %92 : vector<8x128xf32>
      %cst_40 = arith.constant 1.000000e+00 : f32
      %94 = vector.broadcast %cst_40 : f32 to vector<8x128xf32>
      %95 = arith.addf %94, %93 : vector<8x128xf32>
      %96 = arith.divf %94, %95 : vector<8x128xf32>
      %97 = vector.extract_strided_slice %90 {offsets = [0, 128], sizes = [8, 128], strides = [1, 1]} : vector<8x512xf32> to vector<8x128xf32>
      %98 = arith.negf %97 : vector<8x128xf32>
      %99 = math.exp %98 : vector<8x128xf32>
      %cst_41 = arith.constant 1.000000e+00 : f32
      %100 = vector.broadcast %cst_41 : f32 to vector<8x128xf32>
      %101 = arith.addf %100, %99 : vector<8x128xf32>
      %102 = arith.divf %100, %101 : vector<8x128xf32>
      %103 = vector.extract_strided_slice %90 {offsets = [0, 256], sizes = [8, 128], strides = [1, 1]} : vector<8x512xf32> to vector<8x128xf32>
      %104 = math.tanh %103 : vector<8x128xf32>
      %105 = vector.extract_strided_slice %90 {offsets = [0, 384], sizes = [8, 128], strides = [1, 1]} : vector<8x512xf32> to vector<8x128xf32>
      %106 = arith.negf %105 : vector<8x128xf32>
      %107 = math.exp %106 : vector<8x128xf32>
      %cst_42 = arith.constant 1.000000e+00 : f32
      %108 = vector.broadcast %cst_42 : f32 to vector<8x128xf32>
      %109 = arith.addf %108, %107 : vector<8x128xf32>
      %110 = arith.divf %108, %109 : vector<8x128xf32>
      %111 = arith.mulf %102, %82 : vector<8x128xf32>
      %112 = arith.mulf %96, %104 : vector<8x128xf32>
      %113 = arith.addf %111, %112 : vector<8x128xf32>
      %114 = math.tanh %113 : vector<8x128xf32>
      %115 = arith.mulf %110, %114 : vector<8x128xf32>
      %c2 = arith.constant 2 : index
      %c0_43 = arith.constant 0 : index
      %c0_44 = arith.constant 0 : index
      %116 = vector.load %arg13[%c2, %c0_43, %c0_44] : memref<8x8x128xf32, #tpu.memory_space<vmem>>, vector<1x8x128xf32>
      %117 = vector.shape_cast %116 : vector<1x8x128xf32> to vector<8x128xf32>
      %118 = vector.shape_cast %115 : vector<8x128xf32> to vector<1x8x128xf32>
      tpu.vector_store %arg13[%c2, %c0_43, %c0_44], %118 {strides = array<i32>} : memref<8x8x128xf32, #tpu.memory_space<vmem>>, vector<1x8x128xf32>,
      %119 = vector.extract_strided_slice %22 {offsets = [24, 0], sizes = [8, 512], strides = [1, 1]} : vector<64x512xf32> to vector<8x512xf32>
      %cst_45 = arith.constant dense<0.000000e+00> : vector<8x512xf32>
      %120 = tpu.matmul %115, %23, %cst_45 {dimension_numbers = #tpu.dot_dimension_numbers<[1], [0], [0], [1], [0, 0, 1, 1], [], []>} : vector<8x128xf32>, vector<128x512xf32>, vector<8x512xf32> -> vector<8x512xf32>
      %121 = arith.addf %119, %120 : vector<8x512xf32>
      %122 = vector.extract_strided_slice %121 {offsets = [0, 0], sizes = [8, 128], strides = [1, 1]} : vector<8x512xf32> to vector<8x128xf32>
      %123 = arith.negf %122 : vector<8x128xf32>
      %124 = math.exp %123 : vector<8x128xf32>
      %cst_46 = arith.constant 1.000000e+00 : f32
      %125 = vector.broadcast %cst_46 : f32 to vector<8x128xf32>
      %126 = arith.addf %125, %124 : vector<8x128xf32>
      %127 = arith.divf %125, %126 : vector<8x128xf32>
      %128 = vector.extract_strided_slice %121 {offsets = [0, 128], sizes = [8, 128], strides = [1, 1]} : vector<8x512xf32> to vector<8x128xf32>
      %129 = arith.negf %128 : vector<8x128xf32>
      %130 = math.exp %129 : vector<8x128xf32>
      %cst_47 = arith.constant 1.000000e+00 : f32
      %131 = vector.broadcast %cst_47 : f32 to vector<8x128xf32>
      %132 = arith.addf %131, %130 : vector<8x128xf32>
      %133 = arith.divf %131, %132 : vector<8x128xf32>
      %134 = vector.extract_strided_slice %121 {offsets = [0, 256], sizes = [8, 128], strides = [1, 1]} : vector<8x512xf32> to vector<8x128xf32>
      %135 = math.tanh %134 : vector<8x128xf32>
      %136 = vector.extract_strided_slice %121 {offsets = [0, 384], sizes = [8, 128], strides = [1, 1]} : vector<8x512xf32> to vector<8x128xf32>
      %137 = arith.negf %136 : vector<8x128xf32>
      %138 = math.exp %137 : vector<8x128xf32>
      %cst_48 = arith.constant 1.000000e+00 : f32
      %139 = vector.broadcast %cst_48 : f32 to vector<8x128xf32>
      %140 = arith.addf %139, %138 : vector<8x128xf32>
      %141 = arith.divf %139, %140 : vector<8x128xf32>
      %142 = arith.mulf %133, %113 : vector<8x128xf32>
      %143 = arith.mulf %127, %135 : vector<8x128xf32>
      %144 = arith.addf %142, %143 : vector<8x128xf32>
      %145 = math.tanh %144 : vector<8x128xf32>
      %146 = arith.mulf %141, %145 : vector<8x128xf32>
      %c3 = arith.constant 3 : index
      %c0_49 = arith.constant 0 : index
      %c0_50 = arith.constant 0 : index
      %147 = vector.load %arg13[%c3, %c0_49, %c0_50] : memref<8x8x128xf32, #tpu.memory_space<vmem>>, vector<1x8x128xf32>
      %148 = vector.shape_cast %147 : vector<1x8x128xf32> to vector<8x128xf32>
      %149 = vector.shape_cast %146 : vector<8x128xf32> to vector<1x8x128xf32>
      tpu.vector_store %arg13[%c3, %c0_49, %c0_50], %149 {strides = array<i32>} : memref<8x8x128xf32, #tpu.memory_space<vmem>>, vector<1x8x128xf32>,
      %150 = vector.extract_strided_slice %22 {offsets = [32, 0], sizes = [8, 512], strides = [1, 1]} : vector<64x512xf32> to vector<8x512xf32>
      %cst_51 = arith.constant dense<0.000000e+00> : vector<8x512xf32>
      %151 = tpu.matmul %146, %23, %cst_51 {dimension_numbers = #tpu.dot_dimension_numbers<[1], [0], [0], [1], [0, 0, 1, 1], [], []>} : vector<8x128xf32>, vector<128x512xf32>, vector<8x512xf32> -> vector<8x512xf32>
      %152 = arith.addf %150, %151 : vector<8x512xf32>
      %153 = vector.extract_strided_slice %152 {offsets = [0, 0], sizes = [8, 128], strides = [1, 1]} : vector<8x512xf32> to vector<8x128xf32>
      %154 = arith.negf %153 : vector<8x128xf32>
      %155 = math.exp %154 : vector<8x128xf32>
      %cst_52 = arith.constant 1.000000e+00 : f32
      %156 = vector.broadcast %cst_52 : f32 to vector<8x128xf32>
      %157 = arith.addf %156, %155 : vector<8x128xf32>
      %158 = arith.divf %156, %157 : vector<8x128xf32>
      %159 = vector.extract_strided_slice %152 {offsets = [0, 128], sizes = [8, 128], strides = [1, 1]} : vector<8x512xf32> to vector<8x128xf32>
      %160 = arith.negf %159 : vector<8x128xf32>
      %161 = math.exp %160 : vector<8x128xf32>
      %cst_53 = arith.constant 1.000000e+00 : f32
      %162 = vector.broadcast %cst_53 : f32 to vector<8x128xf32>
      %163 = arith.addf %162, %161 : vector<8x128xf32>
      %164 = arith.divf %162, %163 : vector<8x128xf32>
      %165 = vector.extract_strided_slice %152 {offsets = [0, 256], sizes = [8, 128], strides = [1, 1]} : vector<8x512xf32> to vector<8x128xf32>
      %166 = math.tanh %165 : vector<8x128xf32>
      %167 = vector.extract_strided_slice %152 {offsets = [0, 384], sizes = [8, 128], strides = [1, 1]} : vector<8x512xf32> to vector<8x128xf32>
      %168 = arith.negf %167 : vector<8x128xf32>
      %169 = math.exp %168 : vector<8x128xf32>
      %cst_54 = arith.constant 1.000000e+00 : f32
      %170 = vector.broadcast %cst_54 : f32 to vector<8x128xf32>
      %171 = arith.addf %170, %169 : vector<8x128xf32>
      %172 = arith.divf %170, %171 : vector<8x128xf32>
      %173 = arith.mulf %164, %144 : vector<8x128xf32>
      %174 = arith.mulf %158, %166 : vector<8x128xf32>
      %175 = arith.addf %173, %174 : vector<8x128xf32>
      %176 = math.tanh %175 : vector<8x128xf32>
      %177 = arith.mulf %172, %176 : vector<8x128xf32>
      %c4 = arith.constant 4 : index
      %c0_55 = arith.constant 0 : index
      %c0_56 = arith.constant 0 : index
      %178 = vector.load %arg13[%c4, %c0_55, %c0_56] : memref<8x8x128xf32, #tpu.memory_space<vmem>>, vector<1x8x128xf32>
      %179 = vector.shape_cast %178 : vector<1x8x128xf32> to vector<8x128xf32>
      %180 = vector.shape_cast %177 : vector<8x128xf32> to vector<1x8x128xf32>
      tpu.vector_store %arg13[%c4, %c0_55, %c0_56], %180 {strides = array<i32>} : memref<8x8x128xf32, #tpu.memory_space<vmem>>, vector<1x8x128xf32>,
      %181 = vector.extract_strided_slice %22 {offsets = [40, 0], sizes = [8, 512], strides = [1, 1]} : vector<64x512xf32> to vector<8x512xf32>
      %cst_57 = arith.constant dense<0.000000e+00> : vector<8x512xf32>
      %182 = tpu.matmul %177, %23, %cst_57 {dimension_numbers = #tpu.dot_dimension_numbers<[1], [0], [0], [1], [0, 0, 1, 1], [], []>} : vector<8x128xf32>, vector<128x512xf32>, vector<8x512xf32> -> vector<8x512xf32>
      %183 = arith.addf %181, %182 : vector<8x512xf32>
      %184 = vector.extract_strided_slice %183 {offsets = [0, 0], sizes = [8, 128], strides = [1, 1]} : vector<8x512xf32> to vector<8x128xf32>
      %185 = arith.negf %184 : vector<8x128xf32>
      %186 = math.exp %185 : vector<8x128xf32>
      %cst_58 = arith.constant 1.000000e+00 : f32
      %187 = vector.broadcast %cst_58 : f32 to vector<8x128xf32>
      %188 = arith.addf %187, %186 : vector<8x128xf32>
      %189 = arith.divf %187, %188 : vector<8x128xf32>
      %190 = vector.extract_strided_slice %183 {offsets = [0, 128], sizes = [8, 128], strides = [1, 1]} : vector<8x512xf32> to vector<8x128xf32>
      %191 = arith.negf %190 : vector<8x128xf32>
      %192 = math.exp %191 : vector<8x128xf32>
      %cst_59 = arith.constant 1.000000e+00 : f32
      %193 = vector.broadcast %cst_59 : f32 to vector<8x128xf32>
      %194 = arith.addf %193, %192 : vector<8x128xf32>
      %195 = arith.divf %193, %194 : vector<8x128xf32>
      %196 = vector.extract_strided_slice %183 {offsets = [0, 256], sizes = [8, 128], strides = [1, 1]} : vector<8x512xf32> to vector<8x128xf32>
      %197 = math.tanh %196 : vector<8x128xf32>
      %198 = vector.extract_strided_slice %183 {offsets = [0, 384], sizes = [8, 128], strides = [1, 1]} : vector<8x512xf32> to vector<8x128xf32>
      %199 = arith.negf %198 : vector<8x128xf32>
      %200 = math.exp %199 : vector<8x128xf32>
      %cst_60 = arith.constant 1.000000e+00 : f32
      %201 = vector.broadcast %cst_60 : f32 to vector<8x128xf32>
      %202 = arith.addf %201, %200 : vector<8x128xf32>
      %203 = arith.divf %201, %202 : vector<8x128xf32>
      %204 = arith.mulf %195, %175 : vector<8x128xf32>
      %205 = arith.mulf %189, %197 : vector<8x128xf32>
      %206 = arith.addf %204, %205 : vector<8x128xf32>
      %207 = math.tanh %206 : vector<8x128xf32>
      %208 = arith.mulf %203, %207 : vector<8x128xf32>
      %c5 = arith.constant 5 : index
      %c0_61 = arith.constant 0 : index
      %c0_62 = arith.constant 0 : index
      %209 = vector.load %arg13[%c5, %c0_61, %c0_62] : memref<8x8x128xf32, #tpu.memory_space<vmem>>, vector<1x8x128xf32>
      %210 = vector.shape_cast %209 : vector<1x8x128xf32> to vector<8x128xf32>
      %211 = vector.shape_cast %208 : vector<8x128xf32> to vector<1x8x128xf32>
      tpu.vector_store %arg13[%c5, %c0_61, %c0_62], %211 {strides = array<i32>} : memref<8x8x128xf32, #tpu.memory_space<vmem>>, vector<1x8x128xf32>,
      %212 = vector.extract_strided_slice %22 {offsets = [48, 0], sizes = [8, 512], strides = [1, 1]} : vector<64x512xf32> to vector<8x512xf32>
      %cst_63 = arith.constant dense<0.000000e+00> : vector<8x512xf32>
      %213 = tpu.matmul %208, %23, %cst_63 {dimension_numbers = #tpu.dot_dimension_numbers<[1], [0], [0], [1], [0, 0, 1, 1], [], []>} : vector<8x128xf32>, vector<128x512xf32>, vector<8x512xf32> -> vector<8x512xf32>
      %214 = arith.addf %212, %213 : vector<8x512xf32>
      %215 = vector.extract_strided_slice %214 {offsets = [0, 0], sizes = [8, 128], strides = [1, 1]} : vector<8x512xf32> to vector<8x128xf32>
      %216 = arith.negf %215 : vector<8x128xf32>
      %217 = math.exp %216 : vector<8x128xf32>
      %cst_64 = arith.constant 1.000000e+00 : f32
      %218 = vector.broadcast %cst_64 : f32 to vector<8x128xf32>
      %219 = arith.addf %218, %217 : vector<8x128xf32>
      %220 = arith.divf %218, %219 : vector<8x128xf32>
      %221 = vector.extract_strided_slice %214 {offsets = [0, 128], sizes = [8, 128], strides = [1, 1]} : vector<8x512xf32> to vector<8x128xf32>
      %222 = arith.negf %221 : vector<8x128xf32>
      %223 = math.exp %222 : vector<8x128xf32>
      %cst_65 = arith.constant 1.000000e+00 : f32
      %224 = vector.broadcast %cst_65 : f32 to vector<8x128xf32>
      %225 = arith.addf %224, %223 : vector<8x128xf32>
      %226 = arith.divf %224, %225 : vector<8x128xf32>
      %227 = vector.extract_strided_slice %214 {offsets = [0, 256], sizes = [8, 128], strides = [1, 1]} : vector<8x512xf32> to vector<8x128xf32>
      %228 = math.tanh %227 : vector<8x128xf32>
      %229 = vector.extract_strided_slice %214 {offsets = [0, 384], sizes = [8, 128], strides = [1, 1]} : vector<8x512xf32> to vector<8x128xf32>
      %230 = arith.negf %229 : vector<8x128xf32>
      %231 = math.exp %230 : vector<8x128xf32>
      %cst_66 = arith.constant 1.000000e+00 : f32
      %232 = vector.broadcast %cst_66 : f32 to vector<8x128xf32>
      %233 = arith.addf %232, %231 : vector<8x128xf32>
      %234 = arith.divf %232, %233 : vector<8x128xf32>
      %235 = arith.mulf %226, %206 : vector<8x128xf32>
      %236 = arith.mulf %220, %228 : vector<8x128xf32>
      %237 = arith.addf %235, %236 : vector<8x128xf32>
      %238 = math.tanh %237 : vector<8x128xf32>
      %239 = arith.mulf %234, %238 : vector<8x128xf32>
      %c6 = arith.constant 6 : index
      %c0_67 = arith.constant 0 : index
      %c0_68 = arith.constant 0 : index
      %240 = vector.load %arg13[%c6, %c0_67, %c0_68] : memref<8x8x128xf32, #tpu.memory_space<vmem>>, vector<1x8x128xf32>
      %241 = vector.shape_cast %240 : vector<1x8x128xf32> to vector<8x128xf32>
      %242 = vector.shape_cast %239 : vector<8x128xf32> to vector<1x8x128xf32>
      tpu.vector_store %arg13[%c6, %c0_67, %c0_68], %242 {strides = array<i32>} : memref<8x8x128xf32, #tpu.memory_space<vmem>>, vector<1x8x128xf32>,
      %243 = vector.extract_strided_slice %22 {offsets = [56, 0], sizes = [8, 512], strides = [1, 1]} : vector<64x512xf32> to vector<8x512xf32>
      %cst_69 = arith.constant dense<0.000000e+00> : vector<8x512xf32>
      %244 = tpu.matmul %239, %23, %cst_69 {dimension_numbers = #tpu.dot_dimension_numbers<[1], [0], [0], [1], [0, 0, 1, 1], [], []>} : vector<8x128xf32>, vector<128x512xf32>, vector<8x512xf32> -> vector<8x512xf32>
      %245 = arith.addf %243, %244 : vector<8x512xf32>
      %246 = vector.extract_strided_slice %245 {offsets = [0, 0], sizes = [8, 128], strides = [1, 1]} : vector<8x512xf32> to vector<8x128xf32>
      %247 = arith.negf %246 : vector<8x128xf32>
      %248 = math.exp %247 : vector<8x128xf32>
      %cst_70 = arith.constant 1.000000e+00 : f32
      %249 = vector.broadcast %cst_70 : f32 to vector<8x128xf32>
      %250 = arith.addf %249, %248 : vector<8x128xf32>
      %251 = arith.divf %249, %250 : vector<8x128xf32>
      %252 = vector.extract_strided_slice %245 {offsets = [0, 128], sizes = [8, 128], strides = [1, 1]} : vector<8x512xf32> to vector<8x128xf32>
      %253 = arith.negf %252 : vector<8x128xf32>
      %254 = math.exp %253 : vector<8x128xf32>
      %cst_71 = arith.constant 1.000000e+00 : f32
      %255 = vector.broadcast %cst_71 : f32 to vector<8x128xf32>
      %256 = arith.addf %255, %254 : vector<8x128xf32>
      %257 = arith.divf %255, %256 : vector<8x128xf32>
      %258 = vector.extract_strided_slice %245 {offsets = [0, 256], sizes = [8, 128], strides = [1, 1]} : vector<8x512xf32> to vector<8x128xf32>
      %259 = math.tanh %258 : vector<8x128xf32>
      %260 = vector.extract_strided_slice %245 {offsets = [0, 384], sizes = [8, 128], strides = [1, 1]} : vector<8x512xf32> to vector<8x128xf32>
      %261 = arith.negf %260 : vector<8x128xf32>
      %262 = math.exp %261 : vector<8x128xf32>
      %cst_72 = arith.constant 1.000000e+00 : f32
      %263 = vector.broadcast %cst_72 : f32 to vector<8x128xf32>
      %264 = arith.addf %263, %262 : vector<8x128xf32>
      %265 = arith.divf %263, %264 : vector<8x128xf32>
      %266 = arith.mulf %257, %237 : vector<8x128xf32>
      %267 = arith.mulf %251, %259 : vector<8x128xf32>
      %268 = arith.addf %266, %267 : vector<8x128xf32>
      %269 = math.tanh %268 : vector<8x128xf32>
      %270 = arith.mulf %265, %269 : vector<8x128xf32>
      %c7 = arith.constant 7 : index
      %c0_73 = arith.constant 0 : index
      %c0_74 = arith.constant 0 : index
      %271 = vector.load %arg13[%c7, %c0_73, %c0_74] : memref<8x8x128xf32, #tpu.memory_space<vmem>>, vector<1x8x128xf32>
      %272 = vector.shape_cast %271 : vector<1x8x128xf32> to vector<8x128xf32>
      %273 = vector.shape_cast %270 : vector<8x128xf32> to vector<1x8x128xf32>
      tpu.vector_store %arg13[%c7, %c0_73, %c0_74], %273 {strides = array<i32>} : memref<8x8x128xf32, #tpu.memory_space<vmem>>, vector<1x8x128xf32>,
      %c0_75 = arith.constant 0 : index
      %c0_76 = arith.constant 0 : index
      %274 = vector.load %arg11[%c0_75, %c0_76] : memref<8x128xf32, #tpu.memory_space<vmem>>, vector<8x128xf32>
      tpu.vector_store %arg11[%c0_75, %c0_76], %270 {strides = array<i32>} : memref<8x128xf32, #tpu.memory_space<vmem>>, vector<8x128xf32>,
      %c0_77 = arith.constant 0 : index
      %c0_78 = arith.constant 0 : index
      %275 = vector.load %arg12[%c0_77, %c0_78] : memref<8x128xf32, #tpu.memory_space<vmem>>, vector<8x128xf32>
      tpu.vector_store %arg12[%c0_77, %c0_78], %268 {strides = array<i32>} : memref<8x128xf32, #tpu.memory_space<vmem>>, vector<8x128xf32>,
    } else {
    }
    %c0 = arith.constant 0 : index
    %c0_4 = arith.constant 0 : index
    %c0_5 = arith.constant 0 : index
    %8 = vector.load %arg13[%c0, %c0_4, %c0_5] : memref<8x8x128xf32, #tpu.memory_space<vmem>>, vector<8x8x128xf32>
    %9 = vector.shape_cast %8 : vector<8x8x128xf32> to vector<64x128xf32>
    %c0_6 = arith.constant 0 : index
    %c0_7 = arith.constant 0 : index
    %10 = vector.load %arg8[%c0_6, %c0_7] : memref<128x128xf32, #tpu.memory_space<vmem>>, vector<128x128xf32>
    %cst = arith.constant dense<0.000000e+00> : vector<64x128xf32>
    %11 = tpu.matmul %9, %10, %cst {dimension_numbers = #tpu.dot_dimension_numbers<[1], [0], [0], [1], [0, 0, 1, 1], [], []>} : vector<64x128xf32>, vector<128x128xf32>, vector<64x128xf32> -> vector<64x128xf32>
    %c0_8 = arith.constant 0 : index
    %c0_9 = arith.constant 0 : index
    %12 = vector.load %arg9[%c0_8, %c0_9] : memref<1x128xf32, #tpu.memory_space<vmem>>, vector<1x128xf32>
    %13 = vector.broadcast %12 : vector<1x128xf32> to vector<64x128xf32>
    %14 = arith.addf %11, %13 : vector<64x128xf32>
    %15 = vector.shape_cast %14 : vector<64x128xf32> to vector<8x8x128xf32>
    %c0_10 = arith.constant 0 : index
    %c0_11 = arith.constant 0 : index
    %c0_12 = arith.constant 0 : index
    %16 = vector.load %arg10[%c0_10, %c0_11, %c0_12] : memref<8x8x128xf32, #tpu.memory_space<vmem>>, vector<8x8x128xf32>
    tpu.vector_store %arg10[%c0_10, %c0_11, %c0_12], %15 {strides = array<i32>} : memref<8x8x128xf32, #tpu.memory_space<vmem>>, vector<8x8x128xf32>,
    return
  }
  func.func @transform_0(%arg0: i32, %arg1: i32) -> (i32, i32) {
    %c0_i32 = arith.constant 0 : i32
    %c0_i32_0 = arith.constant 0 : i32
    return %arg0, %c0_i32 : i32, i32
  }
  func.func @transform_1(%arg0: i32, %arg1: i32) -> (i32, i32) {
    %c0_i32 = arith.constant 0 : i32
    %c0_i32_0 = arith.constant 0 : i32
    %c0_i32_1 = arith.constant 0 : i32
    return %c0_i32, %c0_i32_0 : i32, i32
  }
  func.func @transform_2(%arg0: i32, %arg1: i32) -> (i32, i32) {
    %c0_i32 = arith.constant 0 : i32
    %c0_i32_0 = arith.constant 0 : i32
    %c0_i32_1 = arith.constant 0 : i32
    return %c0_i32, %c0_i32_0 : i32, i32
  }
  func.func @transform_3(%arg0: i32, %arg1: i32) -> (i32, i32) {
    %c0_i32 = arith.constant 0 : i32
    %c0_i32_0 = arith.constant 0 : i32
    %c0_i32_1 = arith.constant 0 : i32
    return %c0_i32, %c0_i32_0 : i32, i32
  }
  func.func @transform_4(%arg0: i32, %arg1: i32) -> (i32, i32) {
    %c0_i32 = arith.constant 0 : i32
    %c0_i32_0 = arith.constant 0 : i32
    %c0_i32_1 = arith.constant 0 : i32
    return %c0_i32, %c0_i32_0 : i32, i32
  }
  func.func @transform_5(%arg0: i32, %arg1: i32) -> (i32, i32) {
    %c0_i32 = arith.constant 0 : i32
    %c0_i32_0 = arith.constant 0 : i32
    %c0_i32_1 = arith.constant 0 : i32
    return %c0_i32, %c0_i32_0 : i32, i32
  }
  func.func @transform_6(%arg0: i32, %arg1: i32) -> (i32, i32) {
    %c0_i32 = arith.constant 0 : i32
    %c0_i32_0 = arith.constant 0 : i32
    return %c0_i32, %arg1 : i32, i32
  }
  func.func @transform_7(%arg0: i32, %arg1: i32) -> (i32, i32) {
    %c0_i32 = arith.constant 0 : i32
    %c0_i32_0 = arith.constant 0 : i32
    return %c0_i32, %arg1 : i32, i32
  }
  func.func @transform_8(%arg0: i32, %arg1: i32) -> (i32, i32, i32) {
    %c0_i32 = arith.constant 0 : i32
    %c0_i32_0 = arith.constant 0 : i32
    return %arg0, %c0_i32, %arg1 : i32, i32, i32
  }
  func.func @transform_9(%arg0: i32, %arg1: i32) -> (i32, i32) {
    %c0_i32 = arith.constant 0 : i32
    %c0_i32_0 = arith.constant 0 : i32
    %c0_i32_1 = arith.constant 0 : i32
    return %c0_i32, %c0_i32_0 : i32, i32
  }
  func.func @transform_10(%arg0: i32, %arg1: i32) -> (i32, i32) {
    %c0_i32 = arith.constant 0 : i32
    %c0_i32_0 = arith.constant 0 : i32
    %c0_i32_1 = arith.constant 0 : i32
    return %c0_i32, %c0_i32_0 : i32, i32
  }
}

</mosaic_0001>

<llo_original>
// kernel: tpu_custom_call.1
$region0: #{tpu_custom_call.1}
  #allocation0 [shape = 'u32[]', space=smem, size = 0x4, offset = 0x4, fixed_abs, tag = 'smem constant byte address 0x4 - core index']
  #allocation1 [shape = 'u32[72,128]{1,0:T(1,128)}', space=vmem, size = 0x9000, scoped, tag = 'internal scratch']
  #allocation2 [shape = 'f32[8,8,128]{2,1,0:T(8,128)}', space=vmem, size = 0x8000, scoped, tag = 'scratch operand']
  %s0 = inlined_call_operand.vmem [shape: f32[128,16], index: 0, kind: input, shape index: {}]
  %s1 = inlined_call_operand.vmem [shape: f32[8,128], index: 1, kind: input, shape index: {}]
  %s2 = inlined_call_operand.vmem [shape: f32[8,128], index: 2, kind: input, shape index: {}]
  %s3 = inlined_call_operand.hbm [shape: f32[16,512], index: 3, kind: input, shape index: {}]
  %s4 = inlined_call_operand.hbm [shape: f32[128,512], index: 4, kind: input, shape index: {}]
  %s5 = inlined_call_operand.vmem [shape: f32[1,512], index: 5, kind: input, shape index: {}]
  %s6 = inlined_call_operand.vmem [shape: f32[128,128], index: 6, kind: input, shape index: {}]
  %s7 = inlined_call_operand.vmem [shape: f32[1,128], index: 7, kind: input, shape index: {}]
  %s8 = inlined_call_operand.hbm [shape: f32[16,8,128], index: 8, kind: output, shape index: {0}]
  %s9 = inlined_call_operand.hbm [shape: f32[8,128], index: 9, kind: output, shape index: {1}]
  %s10 = inlined_call_operand.hbm [shape: f32[8,128], index: 10, kind: output, shape index: {2}]
  %11 = xla_tuple %s8, %s9, %s10
  %s12 = sld [smem:[#allocation0]]
  $region97: #{tpu_custom_call.1} parent=0
    _
  %s14 = ssub.s32 1, %s12
  %s15 = scalar_select 0, %s14, %s12
  $region1: #{tpu_custom_call.1} parent=0
    #allocation3 [shape = 'u8[32768]{0}', space=vmem, size = 0x8000, scoped, tag = 'input window, operand 3, single buffered']
    #allocation4 [shape = 's32[2]{0}', space=sflag, size = 0x8, scoped, tag = 'scoped memory for tpu_custom_call.1']
    #allocation5 [shape = 's32[2]{0}', space=sflag, size = 0x8, scoped, tag = 'scoped memory for tpu_custom_call.1']
    #allocation6 [shape = 'u8[262144]{0}', space=vmem, size = 0x40000, scoped, tag = 'input window, operand 4, single buffered']
    #allocation7 [shape = 's32[1]{0}', space=sflag, size = 0x4, scoped, tag = 'scoped memory for tpu_custom_call.1']
    #allocation8 [shape = 'u8[65536]{0}', space=vmem, size = 0x10000, scoped, tag = 'output window, operand 0']
    #allocation9 [shape = 'u8[4096]{0}', space=vmem, size = 0x1000, scoped, tag = 'output window, operand 1, single buffered']
    #allocation10 [shape = 's32[1]{0}', space=sflag, size = 0x4, scoped, tag = 'scoped memory for tpu_custom_call.1']
    #allocation11 [shape = 'u8[4096]{0}', space=vmem, size = 0x1000, scoped, tag = 'output window, operand 2, single buffered']
    %16 = vsyncpa [#allocation4], 0
    %17 = vsyncpa [#allocation7], 0
    %18 = vsyncpa [#allocation5], 0
    %s19 = scalar_lea.sflag [#allocation5], 1
    %20 = vsyncpa %s19, 0
    %21 = vsyncpa [#allocation10], 0
    loop: start=0, step=1, limit=4
    $region2: #{tpu_custom_call.1} parent=1 // loop_pre_header
      _
    $region3: #{tpu_custom_call.1} parent=1 // loop_header
      %s23 = sphi 0, %s27
      %p24 = scmp.ge.s32.totalorder %s23, 4
      %s30 = sphi 0, %s42
      %s31 = sphi 0, %s38
      %s32 = sphi 0, %s30
      %s33 = sphi 0, %s31
      %s34 = sphi 0, %s32
      %s35 = sphi 0, %s33
      %s45 = sphi 0, %s47
      %s48 = sphi 0, %s45
      %s49 = sphi 0, %s48
      %s65 = sphi 0, %s49
      %s69 = sphi 0, %s69
      %s71 = sphi 0, %s69
      %s72 = sphi 0, %s71
      %s86 = sphi 0, %s72
      %s90 = sphi 0, %s90
      %s92 = sphi 0, %s90
      %s93 = sphi 0, %s92
      %s107 = sphi 0, %s93
      %s111 = sphi 0, %s111
      %s113 = sphi 0, %s111
      %s114 = sphi 0, %s113
      %s128 = sphi 0, %s114
      %s132 = sphi 0, %s132
      %s134 = sphi 0, %s132
      %s135 = sphi 0, %s134
      %s149 = sphi 0, %s135
      %s153 = sphi 0, %s153
      %s155 = sphi 0, %s153
      %s156 = sphi 0, %s155
      %s170 = sphi 0, %s156
      %s176 = sphi 0, %s178
      %s179 = sphi 0, %s176
      %s180 = sphi 0, %s179
      %s196 = sphi 0, %s180
      %s202 = sphi 0, %s204
      %s205 = sphi 0, %s202
      %s206 = sphi 0, %s205
      %s222 = sphi 0, %s206
      %s230 = sphi 0, %s232
      %s233 = sphi 0, %s230
      %s234 = sphi 0, %s233
      %s250 = sphi 0, %s234
      %s254 = sphi 0, %s254
      %s256 = sphi 0, %s254
      %s257 = sphi 0, %s256
      %s271 = sphi 0, %s257
      %s275 = sphi 0, %s275
      %s277 = sphi 0, %s275
      %s278 = sphi 0, %s277
      %s292 = sphi 0, %s278
    $region4: #{tpu_custom_call.1} parent=1 // loop_header_branch
      %26 = sbr.rel (%p24) target = $region8
    $region5: #{tpu_custom_call.1} parent=1 // loop_body
      %s28 = ssub.s32 %s23, 1
      %s29 = ssub.s32 %s23, 2
      %s36 = sadd.s32 1, %s31
      %p37 = scmp.ge.s32.totalorder %s36, 1
      %s38 = scalar_select %p37, 0, %s36
      %s39 = sadd.s32 1, %s30
      %s40 = scalar_select %p37, %s39, %s30
      %p41 = scmp.ge.s32.totalorder %s40, 2
      %s42 = scalar_select %p41, 0, %s40
      %s43 = ssub.s32 %s30, %s42
      %p44 = scmp.eq.s32.totalorder %s43, 0
      %s46 = sadd.s32 %s45, 1
      %s47 = scalar_select %p44, %s45, %s46
      %p50 = pneg %p44
      %p51 = scmp.eq.s32.totalorder %s23, 1
      %p52 = por %p50, %p51
      %p53 = scmp.ne.s32.totalorder %s45, %s48
      %p54 = scmp.eq.s32.totalorder %s23, 0
      %p55 = por %p53, %p54
      %p56 = scmp.ne.s32.totalorder %s45, %s48
      %p57 = scmp.eq.s32.totalorder %s28, 1
      %p58 = por %p56, %p57
      %p59 = scmp.ne.s32.totalorder %s48, %s49
      %p60 = scmp.eq.s32.totalorder %s28, 0
      %p61 = por %p59, %p60
      %p62 = scmp.ne.s32.totalorder %s48, %s49
      %p63 = scmp.eq.s32.totalorder %s29, 1
      %p64 = por %p62, %p63
      %p66 = scmp.ne.s32.totalorder %s49, %s65
      %p67 = scmp.eq.s32.totalorder %s29, 0
      %p68 = por %p66, %p67
      %s70 = sadd.s32 %s69, 1
      %p73 = scmp.eq.s32.totalorder %s23, 1
      %p74 = scmp.ne.s32.totalorder %s69, %s71
      %p75 = scmp.eq.s32.totalorder %s23, 0
      %p76 = por %p74, %p75
      %p77 = scmp.ne.s32.totalorder %s69, %s71
      %p78 = scmp.eq.s32.totalorder %s28, 1
      %p79 = por %p77, %p78
      %p80 = scmp.ne.s32.totalorder %s71, %s72
      %p81 = scmp.eq.s32.totalorder %s28, 0
      %p82 = por %p80, %p81
      %p83 = scmp.ne.s32.totalorder %s71, %s72
      %p84 = scmp.eq.s32.totalorder %s29, 1
      %p85 = por %p83, %p84
      %p87 = scmp.ne.s32.totalorder %s72, %s86
      %p88 = scmp.eq.s32.totalorder %s29, 0
      %p89 = por %p87, %p88
      %s91 = sadd.s32 %s90, 1
      %p94 = scmp.eq.s32.totalorder %s23, 1
      %p95 = scmp.ne.s32.totalorder %s90, %s92
      %p96 = scmp.eq.s32.totalorder %s23, 0
      %p97 = por %p95, %p96
      %p98 = scmp.ne.s32.totalorder %s90, %s92
      %p99 = scmp.eq.s32.totalorder %s28, 1
      %p100 = por %p98, %p99
      %p101 = scmp.ne.s32.totalorder %s92, %s93
      %p102 = scmp.eq.s32.totalorder %s28, 0
      %p103 = por %p101, %p102
      %p104 = scmp.ne.s32.totalorder %s92, %s93
      %p105 = scmp.eq.s32.totalorder %s29, 1
      %p106 = por %p104, %p105
      %p108 = scmp.ne.s32.totalorder %s93, %s107
      %p109 = scmp.eq.s32.totalorder %s29, 0
      %p110 = por %p108, %p109
      %s112 = sadd.s32 %s111, 1
      %p115 = scmp.eq.s32.totalorder %s23, 1
      %p116 = scmp.ne.s32.totalorder %s111, %s113
      %p117 = scmp.eq.s32.totalorder %s23, 0
      %p118 = por %p116, %p117
      %p119 = scmp.ne.s32.totalorder %s111, %s113
      %p120 = scmp.eq.s32.totalorder %s28, 1
      %p121 = por %p119, %p120
      %p122 = scmp.ne.s32.totalorder %s113, %s114
      %p123 = scmp.eq.s32.totalorder %s28, 0
      %p124 = por %p122, %p123
      %p125 = scmp.ne.s32.totalorder %s113, %s114
      %p126 = scmp.eq.s32.totalorder %s29, 1
      %p127 = por %p125, %p126
      %p129 = scmp.ne.s32.totalorder %s114, %s128
      %p130 = scmp.eq.s32.totalorder %s29, 0
      %p131 = por %p129, %p130
      %s133 = sadd.s32 %s132, 1
      %p136 = scmp.eq.s32.totalorder %s23, 1
      %p137 = scmp.ne.s32.totalorder %s132, %s134
      %p138 = scmp.eq.s32.totalorder %s23, 0
      %p139 = por %p137, %p138
      %p140 = scmp.ne.s32.totalorder %s132, %s134
      %p141 = scmp.eq.s32.totalorder %s28, 1
      %p142 = por %p140, %p141
      %p143 = scmp.ne.s32.totalorder %s134, %s135
      %p144 = scmp.eq.s32.totalorder %s28, 0
      %p145 = por %p143, %p144
      %p146 = scmp.ne.s32.totalorder %s134, %s135
      %p147 = scmp.eq.s32.totalorder %s29, 1
      %p148 = por %p146, %p147
      %p150 = scmp.ne.s32.totalorder %s135, %s149
      %p151 = scmp.eq.s32.totalorder %s29, 0
      %p152 = por %p150, %p151
      %s154 = sadd.s32 %s153, 1
      %p157 = scmp.eq.s32.totalorder %s23, 1
      %p158 = scmp.ne.s32.totalorder %s153, %s155
      %p159 = scmp.eq.s32.totalorder %s23, 0
      %p160 = por %p158, %p159
      %p161 = scmp.ne.s32.totalorder %s153, %s155
      %p162 = scmp.eq.s32.totalorder %s28, 1
      %p163 = por %p161, %p162
      %p164 = scmp.ne.s32.totalorder %s155, %s156
      %p165 = scmp.eq.s32.totalorder %s28, 0
      %p166 = por %p164, %p165
      %p167 = scmp.ne.s32.totalorder %s155, %s156
      %p168 = scmp.eq.s32.totalorder %s29, 1
      %p169 = por %p167, %p168
      %p171 = scmp.ne.s32.totalorder %s156, %s170
      %p172 = scmp.eq.s32.totalorder %s29, 0
      %p173 = por %p171, %p172
      %s174 = ssub.s32 %s31, %s38
      %p175 = scmp.eq.s32.totalorder %s174, 0
      %s177 = sadd.s32 %s176, 1
      %s178 = scalar_select %p175, %s176, %s177
      %p181 = pneg %p175
      %p182 = scmp.eq.s32.totalorder %s23, 1
      %p183 = por %p181, %p182
      %p184 = scmp.ne.s32.totalorder %s176, %s179
      %p185 = scmp.eq.s32.totalorder %s23, 0
      %p186 = por %p184, %p185
      %p187 = scmp.ne.s32.totalorder %s176, %s179
      %p188 = scmp.eq.s32.totalorder %s28, 1
      %p189 = por %p187, %p188
      %p190 = scmp.ne.s32.totalorder %s179, %s180
      %p191 = scmp.eq.s32.totalorder %s28, 0
      %p192 = por %p190, %p191
      %p193 = scmp.ne.s32.totalorder %s179, %s180
      %p194 = scmp.eq.s32.totalorder %s29, 1
      %p195 = por %p193, %p194
      %p197 = scmp.ne.s32.totalorder %s180, %s196
      %p198 = scmp.eq.s32.totalorder %s29, 0
      %p199 = por %p197, %p198
      %s200 = ssub.s32 %s31, %s38
      %p201 = scmp.eq.s32.totalorder %s200, 0
      %s203 = sadd.s32 %s202, 1
      %s204 = scalar_select %p201, %s202, %s203
      %p207 = pneg %p201
      %p208 = scmp.eq.s32.totalorder %s23, 1
      %p209 = por %p207, %p208
      %p210 = scmp.ne.s32.totalorder %s202, %s205
      %p211 = scmp.eq.s32.totalorder %s23, 0
      %p212 = por %p210, %p211
      %p213 = scmp.ne.s32.totalorder %s202, %s205
      %p214 = scmp.eq.s32.totalorder %s28, 1
      %p215 = por %p213, %p214
      %p216 = scmp.ne.s32.totalorder %s205, %s206
      %p217 = scmp.eq.s32.totalorder %s28, 0
      %p218 = por %p216, %p217
      %p219 = scmp.ne.s32.totalorder %s205, %s206
      %p220 = scmp.eq.s32.totalorder %s29, 1
      %p221 = por %p219, %p220
      %p223 = scmp.ne.s32.totalorder %s206, %s222
      %p224 = scmp.eq.s32.totalorder %s29, 0
      %p225 = por %p223, %p224
      %s226 = ssub.s32 %s30, %s42
      %s227 = ssub.s32 %s31, %s38
      %s228 = sor.u32 %s226, %s227
      %p229 = scmp.eq.s32.totalorder %s228, 0
      %s231 = sadd.s32 %s230, 1
      %s232 = scalar_select %p229, %s230, %s231
      %p235 = pneg %p229
      %p236 = scmp.eq.s32.totalorder %s23, 1
      %p237 = por %p235, %p236
      %p238 = scmp.ne.s32.totalorder %s230, %s233
      %p239 = scmp.eq.s32.totalorder %s23, 0
      %p240 = por %p238, %p239
      %p241 = scmp.ne.s32.totalorder %s230, %s233
      %p242 = scmp.eq.s32.totalorder %s28, 1
      %p243 = por %p241, %p242
      %p244 = scmp.ne.s32.totalorder %s233, %s234
      %p245 = scmp.eq.s32.totalorder %s28, 0
      %p246 = por %p244, %p245
      %p247 = scmp.ne.s32.totalorder %s233, %s234
      %p248 = scmp.eq.s32.totalorder %s29, 1
      %p249 = por %p247, %p248
      %p251 = scmp.ne.s32.totalorder %s234, %s250
      %p252 = scmp.eq.s32.totalorder %s29, 0
      %p253 = por %p251, %p252
      %s255 = sadd.s32 %s254, 1
      %p258 = scmp.eq.s32.totalorder %s23, 1
      %p259 = scmp.ne.s32.totalorder %s254, %s256
      %p260 = scmp.eq.s32.totalorder %s23, 0
      %p261 = por %p259, %p260
      %p262 = scmp.ne.s32.totalorder %s254, %s256
      %p263 = scmp.eq.s32.totalorder %s28, 1
      %p264 = por %p262, %p263
      %p265 = scmp.ne.s32.totalorder %s256, %s257
      %p266 = scmp.eq.s32.totalorder %s28, 0
      %p267 = por %p265, %p266
      %p268 = scmp.ne.s32.totalorder %s256, %s257
      %p269 = scmp.eq.s32.totalorder %s29, 1
      %p270 = por %p268, %p269
      %p272 = scmp.ne.s32.totalorder %s257, %s271
      %p273 = scmp.eq.s32.totalorder %s29, 0
      %p274 = por %p272, %p273
      %s276 = sadd.s32 %s275, 1
      %p279 = scmp.eq.s32.totalorder %s23, 1
      %p280 = scmp.ne.s32.totalorder %s275, %s277
      %p281 = scmp.eq.s32.totalorder %s23, 0
      %p282 = por %p280, %p281
      %p283 = scmp.ne.s32.totalorder %s275, %s277
      %p284 = scmp.eq.s32.totalorder %s28, 1
      %p285 = por %p283, %p284
      %p286 = scmp.ne.s32.totalorder %s277, %s278
      %p287 = scmp.eq.s32.totalorder %s28, 0
      %p288 = por %p286, %p287
      %p289 = scmp.ne.s32.totalorder %s277, %s278
      %p290 = scmp.eq.s32.totalorder %s29, 1
      %p291 = por %p289, %p290
      %p293 = scmp.ne.s32.totalorder %s278, %s292
      %p294 = scmp.eq.s32.totalorder %s29, 0
      %p295 = por %p293, %p294
      %p296 = scmp.le.s32.totalorder 1, %s23
      %p297 = scmp.lt.s32.totalorder %s23, 3
      %p298 = pnand %p296, %p297
      %p299 = pneg %p298
      // Predicated region
      $region9: #{tpu_custom_call.1} parent=5 // pred_check
        _
      $region10: #{tpu_custom_call.1} parent=5 // pred_check_branch
        %301 = sbr.rel (%p298) target = $region12
      $region11: #{tpu_custom_call.1} parent=5 // pred_region
        %s302 = ssub.s32 %s23, 1
        // Predicated region
        $region13: #{tpu_custom_call.1} parent=11 // pred_check
          %p303 = pneg %p82
        $region14: #{tpu_custom_call.1} parent=11 // pred_check_branch
          %305 = sbr.rel (%p303) target = $region16
        $region15: #{tpu_custom_call.1} parent=11 // pred_region
          _
        $region16: #{tpu_custom_call.1} parent=11 // pred_fallthru
          _
        // Predicated region
        $region17: #{tpu_custom_call.1} parent=11 // pred_check
          %p306 = pneg %p103
        $region18: #{tpu_custom_call.1} parent=11 // pred_check_branch
          %308 = sbr.rel (%p306) target = $region20
        $region19: #{tpu_custom_call.1} parent=11 // pred_region
          _
        $region20: #{tpu_custom_call.1} parent=11 // pred_fallthru
          _
        // Predicated region
        $region21: #{tpu_custom_call.1} parent=11 // pred_check
          %p309 = pneg %p124
        $region22: #{tpu_custom_call.1} parent=11 // pred_check_branch
          %311 = sbr.rel (%p309) target = $region24
        $region23: #{tpu_custom_call.1} parent=11 // pred_region
          %313 = vsyncadd [#allocation4], 0
          %s314 = sshll.u32 %s3, 4
          %s315 = int_to_ptr.hbm [resolvable:$true] %s314
          %s316 = sshll.u32 [#allocation3], 4
          %s317 = int_to_ptr.vmem [resolvable:$true] %s316
          %322 = dma.hbm_to_vmem [thread:$0]  %s315, 1024, %s317, [#allocation4], 512, 512, 32
        $region24: #{tpu_custom_call.1} parent=11 // pred_fallthru
          _
        // Predicated region
        $region25: #{tpu_custom_call.1} parent=11 // pred_check
          %p323 = pneg %p145
        $region26: #{tpu_custom_call.1} parent=11 // pred_check_branch
          %325 = sbr.rel (%p323) target = $region28
        $region27: #{tpu_custom_call.1} parent=11 // pred_region
          %327 = vsyncadd [#allocation7], 0
          %s328 = sshll.u32 %s4, 4
          %s329 = int_to_ptr.hbm [resolvable:$true] %s328
          %s330 = sshll.u32 [#allocation6], 4
          %s331 = int_to_ptr.vmem [resolvable:$true] %s330
          %336 = dma.hbm_to_vmem [thread:$0]  %s329, 8192, %s331, [#allocation7], 512, 512, 32
        $region28: #{tpu_custom_call.1} parent=11 // pred_fallthru
          _
        // Predicated region
        $region29: #{tpu_custom_call.1} parent=11 // pred_check
          %p337 = pneg %p166
        $region30: #{tpu_custom_call.1} parent=11 // pred_check_branch
          %339 = sbr.rel (%p337) target = $region32
        $region31: #{tpu_custom_call.1} parent=11 // pred_region
          _
        $region32: #{tpu_custom_call.1} parent=11 // pred_fallthru
          _
        // Predicated region
        $region33: #{tpu_custom_call.1} parent=11 // pred_check
          %p340 = pneg %p192
        $region34: #{tpu_custom_call.1} parent=11 // pred_check_branch
          %342 = sbr.rel (%p340) target = $region36
        $region35: #{tpu_custom_call.1} parent=11 // pred_region
          %p343 = scmp.lt.s32.totalorder %s33, 0
          %s344 = scalar_select %p343, %s33, 0
          %s345 = smul.addr %s344, 8
          %s346 = scalar_lea.vmem %s6, %s345
        $region36: #{tpu_custom_call.1} parent=11 // pred_fallthru
          _
        // Predicated region
        $region37: #{tpu_custom_call.1} parent=11 // pred_check
          %p347 = pneg %p218
        $region38: #{tpu_custom_call.1} parent=11 // pred_check_branch
          %349 = sbr.rel (%p347) target = $region40
        $region39: #{tpu_custom_call.1} parent=11 // pred_region
          %p350 = scmp.lt.s32.totalorder %s33, 0
          %s351 = scalar_select %p350, %s33, 0
          %s352 = scalar_lea.vmem %s7, %s351
        $region40: #{tpu_custom_call.1} parent=11 // pred_fallthru
          _
      $region12: #{tpu_custom_call.1} parent=5 // pred_fallthru
        _
      %p353 = scmp.lt.s32.totalorder %s23, 2
      // Predicated region
      $region41: #{tpu_custom_call.1} parent=5 // pred_check
        %p354 = pneg %p353
      $region42: #{tpu_custom_call.1} parent=5 // pred_check_branch
        %356 = sbr.rel (%p354) target = $region44
      $region43: #{tpu_custom_call.1} parent=5 // pred_region
        // Predicated region
        $region45: #{tpu_custom_call.1} parent=43 // pred_check
          %p357 = pneg %p55
        $region46: #{tpu_custom_call.1} parent=43 // pred_check_branch
          %359 = sbr.rel (%p357) target = $region48
        $region47: #{tpu_custom_call.1} parent=43 // pred_region
          %s360 = smul.u32 8, %s30
          %p361 = scmp.lt.s32.totalorder %s360, 15
          %s362 = scalar_select %p361, %s360, 15
          %s363 = smul.addr %s362, 8
          %s364 = scalar_lea.vmem %s0, %s363
          %s365 = smul.u32 8, %s30
        $region48: #{tpu_custom_call.1} parent=43 // pred_fallthru
          _
      $region44: #{tpu_custom_call.1} parent=5 // pred_fallthru
        _
      %p366 = scmp.le.s32.totalorder 1, %s23
      %p367 = scmp.lt.s32.totalorder %s23, 3
      %p368 = pnand %p366, %p367
      %p369 = pneg %p368
      // Predicated region
      $region49: #{tpu_custom_call.1} parent=5 // pred_check
        _
      $region50: #{tpu_custom_call.1} parent=5 // pred_check_branch
        %371 = sbr.rel (%p368) target = $region52
      $region51: #{tpu_custom_call.1} parent=5 // pred_region
        %s372 = ssub.s32 %s23, 1
        // Predicated region
        $region53: #{tpu_custom_call.1} parent=51 // pred_check
          %p373 = pneg %p124
        $region54: #{tpu_custom_call.1} parent=51 // pred_check_branch
          %375 = sbr.rel (%p373) target = $region56
        $region55: #{tpu_custom_call.1} parent=51 // pred_region
          %377 = dma.done [#allocation4], 1024
        $region56: #{tpu_custom_call.1} parent=51 // pred_fallthru
          _
        // Predicated region
        $region57: #{tpu_custom_call.1} parent=51 // pred_check
          %p378 = pneg %p145
        $region58: #{tpu_custom_call.1} parent=51 // pred_check_branch
          %380 = sbr.rel (%p378) target = $region60
        $region59: #{tpu_custom_call.1} parent=51 // pred_region
          %382 = dma.done [#allocation7], 8192
        $region60: #{tpu_custom_call.1} parent=51 // pred_fallthru
          _
        %s383 = smul.u32 8, %s32
        %p384 = scmp.lt.s32.totalorder %s383, 15
        %s385 = scalar_select %p384, %s383, 15
        %s386 = smul.addr %s385, 8
        %s387 = scalar_lea.vmem %s0, %s386
        %p388 = pneg %p61
        %p389 = pneg %p58
        %p390 = pneg %p82
        %p391 = pneg %p79
        %p392 = pneg %p103
        %p393 = pneg %p100
        %p394 = pneg %p124
        %p395 = pneg %p121
        %p396 = pneg %p145
        %p397 = pneg %p142
        %p398 = pneg %p166
        %p399 = pneg %p163
        %p400 = scmp.lt.s32.totalorder %s33, 0
        %s401 = scalar_select %p400, %s33, 0
        %s402 = smul.addr %s401, 8
        %s403 = scalar_lea.vmem %s6, %s402
        %p404 = pneg %p192
        %p405 = pneg %p189
        %p406 = scmp.lt.s32.totalorder %s33, 0
        %s407 = scalar_select %p406, %s33, 0
        %s408 = scalar_lea.vmem %s7, %s407
        %p409 = pneg %p218
        %p410 = pneg %p215
        %p411 = pneg %p246
        %p412 = pneg %p243
        %s413 = sand.u32 %s233, 1
        %s414 = scalar_lea.sflag [#allocation5], %s413
        %s415 = sand.u32 %s233, 1
        %s416 = smul.addr %s415, 64
        %s417 = scalar_lea.vmem [#allocation8], %s416
        %p418 = pneg %p267
        %p419 = pneg %p264
        %p420 = pneg %p288
        %p421 = pneg %p285
        %s422 = smul.u32 8, %s32
        %p423 = scmp.lt.s32.totalorder %s422, 15
        %s424 = scalar_select %p423, %s422, 15
        %s425 = smul.addr %s424, 8
        %s426 = scalar_lea.vmem %s0, %s425
        %s427 = smul.u32 8, %s32
        %p428 = scmp.lt.s32.totalorder %s33, 0
        %s429 = scalar_select %p428, %s33, 0
        %s430 = smul.addr %s429, 8
        %s431 = scalar_lea.vmem %s6, %s430
        %p432 = scmp.lt.s32.totalorder %s33, 0
        %s433 = scalar_select %p432, %s33, 0
        %s434 = scalar_lea.vmem %s7, %s433
        %s435 = smul.u32 8, %s32
        %p436 = scmp.eq.s32.totalorder %s32, 0
        %p437 = scmp.eq.s32.totalorder %s33, 0
        %p438 = pnand %p436, %p437
        %p439 = pneg %p438
        // Predicated region
        $region61: #{tpu_custom_call.1} parent=51 // pred_check
          _
        $region62: #{tpu_custom_call.1} parent=51 // pred_check_branch
          %441 = sbr.rel (%p438) target = $region64
        $region63: #{tpu_custom_call.1} parent=51 // pred_region
          %v442 = vld [vmem:[%s1] sm:$0xff]
          %443 = vst [vmem:[#allocation9] sm:$0xff] %v442
          %v444 = vld [vmem:[%s2] sm:$0xff]
          %445 = vst [vmem:[#allocation11] sm:$0xff] %v444
        $region64: #{tpu_custom_call.1} parent=51 // pred_fallthru
          _
        // Predicated region
        $region65: #{tpu_custom_call.1} parent=51 // pred_check
          %p446 = pneg %p437
        $region66: #{tpu_custom_call.1} parent=51 // pred_check_branch
          %448 = sbr.rel (%p446) target = $region68
        $region67: #{tpu_custom_call.1} parent=51 // pred_region
          %v449 = vld [vmem:[%s426] sm:$0xff]
          %v450 = vld [vmem:[%s426 + $0x8] sm:$0xff]
          %v451 = vld [vmem:[%s426 + $0x10] sm:$0xff]
          %v452 = vld [vmem:[%s426 + $0x18] sm:$0xff]
          %v453 = vld [vmem:[%s426 + $0x20] sm:$0xff]
          %v454 = vld [vmem:[%s426 + $0x28] sm:$0xff]
          %v455 = vld [vmem:[%s426 + $0x30] sm:$0xff]
          %v456 = vld [vmem:[%s426 + $0x38] sm:$0xff]
          %v457 = vld [vmem:[#allocation3] sm:$0xff]
          %v458 = vld [vmem:[#allocation3 + $0x8] sm:$0xff]
          %v459 = vld [vmem:[#allocation3 + $0x10] sm:$0xff]
          %v460 = vld [vmem:[#allocation3 + $0x18] sm:$0xff]
          %v461 = vld [vmem:[#allocation3 + $0x20] sm:$0xff]
          %v462 = vld [vmem:[#allocation3 + $0x28] sm:$0xff]
          %v463 = vld [vmem:[#allocation3 + $0x30] sm:$0xff]
          %v464 = vld [vmem:[#allocation3 + $0x38] sm:$0xff]
          %v465 = vld [vmem:[%s5] sm:$0xf]
          %v467 = vperm.slane %v465, 0
          %v468 = vperm.slane %v465, 1
          %v469 = vperm.slane %v465, 2
          %v470 = vperm.slane %v465, 3
          %vm475 = vcmask 130048
          %v477 = vsel %vm475, %v449, 0
          %v480 = vsel %vm475, %v450, 0
          %v483 = vsel %vm475, %v451, 0
          %v486 = vsel %vm475, %v452, 0
          %v489 = vsel %vm475, %v453, 0
          %v492 = vsel %vm475, %v454, 0
          %v495 = vsel %vm475, %v455, 0
          %v498 = vsel %vm475, %v456, 0
          %500 = vmatpush.msra.mxu0 0.0
          %501 = vmatpush.msra.mxu0 0.0
          %502 = vmatpush.msra.mxu0 0.0
          %503 = vmatpush.msra.mxu0 0.0
          %504 = vmatpush.msra.mxu0 0.0
          %505 = vmatpush.msra.mxu0 0.0
          %506 = vmatpush.msra.mxu0 0.0
          %507 = vmatpush.msra.mxu0 0.0
          %508 = vmatpush.msra.mxu0 0.0
          %509 = vmatpush.msra.mxu0 0.0
          %510 = vmatpush.msra.mxu0 0.0
          %511 = vmatpush.msra.mxu0 0.0
          %512 = vmatpush.msra.mxu0 0.0
          %513 = vmatpush.msra.mxu0 0.0
          %514 = vmatpush.msra.mxu0 %v461
          %515 = vmatpush.msra.mxu0 %v457
          %516 = vmatmul.f32.gmra.mxu0 %v477
          %v517 = vpop.f32.mrf.mxu0
          %v518 = vadd.f32 %v467, %v517
          %519 = vmatmul.f32.gmra.mxu0 %v480
          %v520 = vpop.f32.mrf.mxu0
          %v521 = vadd.f32 %v467, %v520
          %522 = vmatmul.f32.gmra.mxu0 %v483
          %v523 = vpop.f32.mrf.mxu0
          %v524 = vadd.f32 %v467, %v523
          %525 = vmatmul.f32.gmra.mxu0 %v486
          %v526 = vpop.f32.mrf.mxu0
          %v527 = vadd.f32 %v467, %v526
          %528 = vmatmul.f32.gmra.mxu0 %v489
          %v529 = vpop.f32.mrf.mxu0
          %v530 = vadd.f32 %v467, %v529
          %531 = vmatmul.f32.gmra.mxu0 %v492
          %v532 = vpop.f32.mrf.mxu0
          %v533 = vadd.f32 %v467, %v532
          %534 = vmatmul.f32.gmra.mxu0 %v495
          %v535 = vpop.f32.mrf.mxu0
          %v536 = vadd.f32 %v467, %v535
          %537 = vmatmul.f32.gmra.mxu0 %v498
          %v538 = vpop.f32.mrf.mxu0
          %v539 = vadd.f32 %v467, %v538
          %540 = vdwg.mxu0
          %541 = vmatpush.msra.mxu0 0.0
          %542 = vmatpush.msra.mxu0 0.0
          %543 = vmatpush.msra.mxu0 0.0
          %544 = vmatpush.msra.mxu0 0.0
          %545 = vmatpush.msra.mxu0 0.0
          %546 = vmatpush.msra.mxu0 0.0
          %547 = vmatpush.msra.mxu0 0.0
          %548 = vmatpush.msra.mxu0 0.0
          %549 = vmatpush.msra.mxu0 0.0
          %550 = vmatpush.msra.mxu0 0.0
          %551 = vmatpush.msra.mxu0 0.0
          %552 = vmatpush.msra.mxu0 0.0
          %553 = vmatpush.msra.mxu0 0.0
          %554 = vmatpush.msra.mxu0 0.0
          %555 = vmatpush.msra.mxu0 %v462
          %556 = vmatpush.msra.mxu0 %v458
          %557 = vmatmul.f32.gmra.mxu0 %v477
          %v558 = vpop.f32.mrf.mxu0
          %v559 = vadd.f32 %v468, %v558
          %560 = vmatmul.f32.gmra.mxu0 %v480
          %v561 = vpop.f32.mrf.mxu0
          %v562 = vadd.f32 %v468, %v561
          %563 = vmatmul.f32.gmra.mxu0 %v483
          %v564 = vpop.f32.mrf.mxu0
          %v565 = vadd.f32 %v468, %v564
          %566 = vmatmul.f32.gmra.mxu0 %v486
          %v567 = vpop.f32.mrf.mxu0
          %v568 = vadd.f32 %v468, %v567
          %569 = vmatmul.f32.gmra.mxu0 %v489
          %v570 = vpop.f32.mrf.mxu0
          %v571 = vadd.f32 %v468, %v570
          %572 = vmatmul.f32.gmra.mxu0 %v492
          %v573 = vpop.f32.mrf.mxu0
          %v574 = vadd.f32 %v468, %v573
          %575 = vmatmul.f32.gmra.mxu0 %v495
          %v576 = vpop.f32.mrf.mxu0
          %v577 = vadd.f32 %v468, %v576
          %578 = vmatmul.f32.gmra.mxu0 %v498
          %v579 = vpop.f32.mrf.mxu0
          %v580 = vadd.f32 %v468, %v579
          %581 = vdwg.mxu0
          %582 = vmatpush.msra.mxu0 0.0
          %583 = vmatpush.msra.mxu0 0.0
          %584 = vmatpush.msra.mxu0 0.0
          %585 = vmatpush.msra.mxu0 0.0
          %586 = vmatpush.msra.mxu0 0.0
          %587 = vmatpush.msra.mxu0 0.0
          %588 = vmatpush.msra.mxu0 0.0
          %589 = vmatpush.msra.mxu0 0.0
          %590 = vmatpush.msra.mxu0 0.0
          %591 = vmatpush.msra.mxu0 0.0
          %592 = vmatpush.msra.mxu0 0.0
          %593 = vmatpush.msra.mxu0 0.0
          %594 = vmatpush.msra.mxu0 0.0
          %595 = vmatpush.msra.mxu0 0.0
          %596 = vmatpush.msra.mxu0 %v463
          %597 = vmatpush.msra.mxu0 %v459
          %598 = vmatmul.f32.gmra.mxu0 %v477
          %v599 = vpop.f32.mrf.mxu0
          %v600 = vadd.f32 %v469, %v599
          %601 = vmatmul.f32.gmra.mxu0 %v480
          %v602 = vpop.f32.mrf.mxu0
          %v603 = vadd.f32 %v469, %v602
          %604 = vmatmul.f32.gmra.mxu0 %v483
          %v605 = vpop.f32.mrf.mxu0
          %v606 = vadd.f32 %v469, %v605
          %607 = vmatmul.f32.gmra.mxu0 %v486
          %v608 = vpop.f32.mrf.mxu0
          %v609 = vadd.f32 %v469, %v608
          %610 = vmatmul.f32.gmra.mxu0 %v489
          %v611 = vpop.f32.mrf.mxu0
          %v612 = vadd.f32 %v469, %v611
          %613 = vmatmul.f32.gmra.mxu0 %v492
          %v614 = vpop.f32.mrf.mxu0
          %v615 = vadd.f32 %v469, %v614
          %616 = vmatmul.f32.gmra.mxu0 %v495
          %v617 = vpop.f32.mrf.mxu0
          %v618 = vadd.f32 %v469, %v617
          %619 = vmatmul.f32.gmra.mxu0 %v498
          %v620 = vpop.f32.mrf.mxu0
          %v621 = vadd.f32 %v469, %v620
          %622 = vdwg.mxu0
          %623 = vmatpush.msra.mxu0 0.0
          %624 = vmatpush.msra.mxu0 0.0
          %625 = vmatpush.msra.mxu0 0.0
          %626 = vmatpush.msra.mxu0 0.0
          %627 = vmatpush.msra.mxu0 0.0
          %628 = vmatpush.msra.mxu0 0.0
          %629 = vmatpush.msra.mxu0 0.0
          %630 = vmatpush.msra.mxu0 0.0
          %631 = vmatpush.msra.mxu0 0.0
          %632 = vmatpush.msra.mxu0 0.0
          %633 = vmatpush.msra.mxu0 0.0
          %634 = vmatpush.msra.mxu0 0.0
          %635 = vmatpush.msra.mxu0 0.0
          %636 = vmatpush.msra.mxu0 0.0
          %637 = vmatpush.msra.mxu0 %v464
          %638 = vmatpush.msra.mxu0 %v460
          %639 = vmatmul.f32.gmra.mxu0 %v477
          %v640 = vpop.f32.mrf.mxu0
          %v641 = vadd.f32 %v470, %v640
          %642 = vmatmul.f32.gmra.mxu0 %v480
          %v643 = vpop.f32.mrf.mxu0
          %v644 = vadd.f32 %v470, %v643
          %645 = vmatmul.f32.gmra.mxu0 %v483
          %v646 = vpop.f32.mrf.mxu0
          %v647 = vadd.f32 %v470, %v646
          %648 = vmatmul.f32.gmra.mxu0 %v486
          %v649 = vpop.f32.mrf.mxu0
          %v650 = vadd.f32 %v470, %v649
          %651 = vmatmul.f32.gmra.mxu0 %v489
          %v652 = vpop.f32.mrf.mxu0
          %v653 = vadd.f32 %v470, %v652
          %654 = vmatmul.f32.gmra.mxu0 %v492
          %v655 = vpop.f32.mrf.mxu0
          %v656 = vadd.f32 %v470, %v655
          %657 = vmatmul.f32.gmra.mxu0 %v495
          %v658 = vpop.f32.mrf.mxu0
          %v659 = vadd.f32 %v470, %v658
          %660 = vmatmul.f32.gmra.mxu0 %v498
          %v661 = vpop.f32.mrf.mxu0
          %v662 = vadd.f32 %v470, %v661
          %663 = vdwg.mxu0
          %v664 = vld [vmem:[#allocation6] sm:$0xff]
          %v665 = vld [vmem:[#allocation6 + $0x8] sm:$0xff]
          %v666 = vld [vmem:[#allocation6 + $0x10] sm:$0xff]
          %v667 = vld [vmem:[#allocation6 + $0x18] sm:$0xff]
          %v668 = vld [vmem:[#allocation6 + $0x20] sm:$0xff]
          %v669 = vld [vmem:[#allocation6 + $0x28] sm:$0xff]
          %v670 = vld [vmem:[#allocation6 + $0x30] sm:$0xff]
          %v671 = vld [vmem:[#allocation6 + $0x38] sm:$0xff]
          %v672 = vld [vmem:[#allocation6 + $0x40] sm:$0xff]
          %v673 = vld [vmem:[#allocation6 + $0x48] sm:$0xff]
          %v674 = vld [vmem:[#allocation6 + $0x50] sm:$0xff]
          %v675 = vld [vmem:[#allocation6 + $0x58] sm:$0xff]
          %v676 = vld [vmem:[#allocation6 + $0x60] sm:$0xff]
          %v677 = vld [vmem:[#allocation6 + $0x68] sm:$0xff]
          %v678 = vld [vmem:[#allocation6 + $0x70] sm:$0xff]
          %v679 = vld [vmem:[#allocation6 + $0x78] sm:$0xff]
          %v680 = vld [vmem:[#allocation6 + $0x80] sm:$0xff]
          %v681 = vld [vmem:[#allocation6 + $0x88] sm:$0xff]
          %v682 = vld [vmem:[#allocation6 + $0x90] sm:$0xff]
          %v683 = vld [vmem:[#allocation6 + $0x98] sm:$0xff]
          %v684 = vld [vmem:[#allocation6 + $0xa0] sm:$0xff]
          %v685 = vld [vmem:[#allocation6 + $0xa8] sm:$0xff]
          %v686 = vld [vmem:[#allocation6 + $0xb0] sm:$0xff]
          %v687 = vld [vmem:[#allocation6 + $0xb8] sm:$0xff]
          %v688 = vld [vmem:[#allocation6 + $0xc0] sm:$0xff]
          %v689 = vld [vmem:[#allocation6 + $0xc8] sm:$0xff]
          %v690 = vld [vmem:[#allocation6 + $0xd0] sm:$0xff]
          %v691 = vld [vmem:[#allocation6 + $0xd8] sm:$0xff]
          %v692 = vld [vmem:[#allocation6 + $0xe0] sm:$0xff]
          %v693 = vld [vmem:[#allocation6 + $0xe8] sm:$0xff]
          %v694 = vld [vmem:[#allocation6 + $0xf0] sm:$0xff]
          %v695 = vld [vmem:[#allocation6 + $0xf8] sm:$0xff]
          %v696 = vld [vmem:[#allocation6 + $0x100] sm:$0xff]
          %v697 = vld [vmem:[#allocation6 + $0x108] sm:$0xff]
          %v698 = vld [vmem:[#allocation6 + $0x110] sm:$0xff]
          %v699 = vld [vmem:[#allocation6 + $0x118] sm:$0xff]
          %v700 = vld [vmem:[#allocation6 + $0x120] sm:$0xff]
          %v701 = vld [vmem:[#allocation6 + $0x128] sm:$0xff]
          %v702 = vld [vmem:[#allocation6 + $0x130] sm:$0xff]
          %v703 = vld [vmem:[#allocation6 + $0x138] sm:$0xff]
          %v704 = vld [vmem:[#allocation6 + $0x140] sm:$0xff]
          %v705 = vld [vmem:[#allocation6 + $0x148] sm:$0xff]
          %v706 = vld [vmem:[#allocation6 + $0x150] sm:$0xff]
          %v707 = vld [vmem:[#allocation6 + $0x158] sm:$0xff]
          %v708 = vld [vmem:[#allocation6 + $0x160] sm:$0xff]
          %v709 = vld [vmem:[#allocation6 + $0x168] sm:$0xff]
          %v710 = vld [vmem:[#allocation6 + $0x170] sm:$0xff]
          %v711 = vld [vmem:[#allocation6 + $0x178] sm:$0xff]
          %v712 = vld [vmem:[#allocation6 + $0x180] sm:$0xff]
          %v713 = vld [vmem:[#allocation6 + $0x188] sm:$0xff]
          %v714 = vld [vmem:[#allocation6 + $0x190] sm:$0xff]
          %v715 = vld [vmem:[#allocation6 + $0x198] sm:$0xff]
          %v716 = vld [vmem:[#allocation6 + $0x1a0] sm:$0xff]
          %v717 = vld [vmem:[#allocation6 + $0x1a8] sm:$0xff]
          %v718 = vld [vmem:[#allocation6 + $0x1b0] sm:$0xff]
          %v719 = vld [vmem:[#allocation6 + $0x1b8] sm:$0xff]
          %v720 = vld [vmem:[#allocation6 + $0x1c0] sm:$0xff]
          %v721 = vld [vmem:[#allocation6 + $0x1c8] sm:$0xff]
          %v722 = vld [vmem:[#allocation6 + $0x1d0] sm:$0xff]
          %v723 = vld [vmem:[#allocation6 + $0x1d8] sm:$0xff]
          %v724 = vld [vmem:[#allocation6 + $0x1e0] sm:$0xff]
          %v725 = vld [vmem:[#allocation6 + $0x1e8] sm:$0xff]
          %v726 = vld [vmem:[#allocation6 + $0x1f0] sm:$0xff]
          %v727 = vld [vmem:[#allocation6 + $0x1f8] sm:$0xff]
          %v728 = vld [vmem:[#allocation9] sm:$0xff]
          %v729 = vld [vmem:[#allocation11] sm:$0xff]
          %730 = vmatpush.msra.mxu0 %v724
          %731 = vmatpush.msra.mxu0 %v720
          %732 = vmatpush.msra.mxu0 %v716
          %733 = vmatpush.msra.mxu0 %v712
          %734 = vmatpush.msra.mxu0 %v708
          %735 = vmatpush.msra.mxu0 %v704
          %736 = vmatpush.msra.mxu0 %v700
          %737 = vmatpush.msra.mxu0 %v696
          %738 = vmatpush.msra.mxu0 %v692
          %739 = vmatpush.msra.mxu0 %v688
          %740 = vmatpush.msra.mxu0 %v684
          %741 = vmatpush.msra.mxu0 %v680
          %742 = vmatpush.msra.mxu0 %v676
          %743 = vmatpush.msra.mxu0 %v672
          %744 = vmatpush.msra.mxu0 %v668
          %745 = vmatpush.msra.mxu0 %v664
          %746 = vmatmul.f32.gmra.mxu0 %v728
          %v747 = vpop.f32.mrf.mxu0
          %v748 = vadd.f32 0.0, %v747
          %749 = vdwg.mxu0
          %750 = vmatpush.msra.mxu0 %v725
          %751 = vmatpush.msra.mxu0 %v721
          %752 = vmatpush.msra.mxu0 %v717
          %753 = vmatpush.msra.mxu0 %v713
          %754 = vmatpush.msra.mxu0 %v709
          %755 = vmatpush.msra.mxu0 %v705
          %756 = vmatpush.msra.mxu0 %v701
          %757 = vmatpush.msra.mxu0 %v697
          %758 = vmatpush.msra.mxu0 %v693
          %759 = vmatpush.msra.mxu0 %v689
          %760 = vmatpush.msra.mxu0 %v685
          %761 = vmatpush.msra.mxu0 %v681
          %762 = vmatpush.msra.mxu0 %v677
          %763 = vmatpush.msra.mxu0 %v673
          %764 = vmatpush.msra.mxu0 %v669
          %765 = vmatpush.msra.mxu0 %v665
          %766 = vmatmul.f32.gmra.mxu0 %v728
          %v767 = vpop.f32.mrf.mxu0
          %v768 = vadd.f32 0.0, %v767
          %769 = vdwg.mxu0
          %770 = vmatpush.msra.mxu0 %v726
          %771 = vmatpush.msra.mxu0 %v722
          %772 = vmatpush.msra.mxu0 %v718
          %773 = vmatpush.msra.mxu0 %v714
          %774 = vmatpush.msra.mxu0 %v710
          %775 = vmatpush.msra.mxu0 %v706
          %776 = vmatpush.msra.mxu0 %v702
          %777 = vmatpush.msra.mxu0 %v698
          %778 = vmatpush.msra.mxu0 %v694
          %779 = vmatpush.msra.mxu0 %v690
          %780 = vmatpush.msra.mxu0 %v686
          %781 = vmatpush.msra.mxu0 %v682
          %782 = vmatpush.msra.mxu0 %v678
          %783 = vmatpush.msra.mxu0 %v674
          %784 = vmatpush.msra.mxu0 %v670
          %785 = vmatpush.msra.mxu0 %v666
          %786 = vmatmul.f32.gmra.mxu0 %v728
          %v787 = vpop.f32.mrf.mxu0
          %v788 = vadd.f32 0.0, %v787
          %789 = vdwg.mxu0
          %790 = vmatpush.msra.mxu0 %v727
          %791 = vmatpush.msra.mxu0 %v723
          %792 = vmatpush.msra.mxu0 %v719
          %793 = vmatpush.msra.mxu0 %v715
          %794 = vmatpush.msra.mxu0 %v711
          %795 = vmatpush.msra.mxu0 %v707
          %796 = vmatpush.msra.mxu0 %v703
          %797 = vmatpush.msra.mxu0 %v699
          %798 = vmatpush.msra.mxu0 %v695
          %799 = vmatpush.msra.mxu0 %v691
          %800 = vmatpush.msra.mxu0 %v687
          %801 = vmatpush.msra.mxu0 %v683
          %802 = vmatpush.msra.mxu0 %v679
          %803 = vmatpush.msra.mxu0 %v675
          %804 = vmatpush.msra.mxu0 %v671
          %805 = vmatpush.msra.mxu0 %v667
          %806 = vmatmul.f32.gmra.mxu0 %v728
          %v807 = vpop.f32.mrf.mxu0
          %v808 = vadd.f32 0.0, %v807
          %809 = vdwg.mxu0
          %v810 = vadd.f32 %v518, %v748
          %v811 = vadd.f32 %v559, %v768
          %v812 = vadd.f32 %v600, %v788
          %v813 = vadd.f32 %v641, %v808
          %v814 = vxor.u32 %v810, 2147483648
          %v815 = vmul.f32 %v814, 1.442695
          %v816 = vpow.pop %v815
          %v817 = vadd.f32 %v816, 1.0
          %v818 = vrcp.pop %v817
          %v819 = vmul.f32 %v817, %v818
          %v820 = vsub.f32 1.0, %v819
          %v821 = vmul.f32 %v818, %v820
          %v822 = vadd.f32 %v818, %v821
          %vm823 = vweird.f32 %v817
          %vm824 = vweird.f32 %v818
          %vm825 = vmor %vm823, %vm824
          %v826 = vsel %vm825, %v818, %v822
          %v827 = vand.u32 2147483647, %v817
          %vm828 = vcmp.eq.f32.partialorder %v827, 8.507059e+37
          %v829 = vand.u32 %v817, 2147483648
          %v830 = vor.u32 1.1754944e-38, %v829
          %v831 = vsel %vm828, %v830, %v826
          %v832 = vmul.f32 1.0, %v831
          %v833 = vxor.u32 %v811, 2147483648
          %v834 = vmul.f32 %v833, 1.442695
          %v835 = vpow.pop %v834
          %v836 = vadd.f32 %v835, 1.0
          %v837 = vrcp.pop %v836
          %v838 = vmul.f32 %v836, %v837
          %v839 = vsub.f32 1.0, %v838
          %v840 = vmul.f32 %v837, %v839
          %v841 = vadd.f32 %v837, %v840
          %vm842 = vweird.f32 %v836
          %vm843 = vweird.f32 %v837
          %vm844 = vmor %vm842, %vm843
          %v845 = vsel %vm844, %v837, %v841
          %v846 = vand.u32 2147483647, %v836
          %vm847 = vcmp.eq.f32.partialorder %v846, 8.507059e+37
          %v848 = vand.u32 %v836, 2147483648
          %v849 = vor.u32 1.1754944e-38, %v848
          %v850 = vsel %vm847, %v849, %v845
          %v851 = vmul.f32 1.0, %v850
          %v852 = vtanh.pop %v812
          %v853 = vxor.u32 %v813, 2147483648
          %v854 = vmul.f32 %v853, 1.442695
          %v855 = vpow.pop %v854
          %v856 = vadd.f32 %v855, 1.0
          %v857 = vrcp.pop %v856
          %v858 = vmul.f32 %v856, %v857
          %v859 = vsub.f32 1.0, %v858
          %v860 = vmul.f32 %v857, %v859
          %v861 = vadd.f32 %v857, %v860
          %vm862 = vweird.f32 %v856
          %vm863 = vweird.f32 %v857
          %vm864 = vmor %vm862, %vm863
          %v865 = vsel %vm864, %v857, %v861
          %v866 = vand.u32 2147483647, %v856
          %vm867 = vcmp.eq.f32.partialorder %v866, 8.507059e+37
          %v868 = vand.u32 %v856, 2147483648
          %v869 = vor.u32 1.1754944e-38, %v868
          %v870 = vsel %vm867, %v869, %v865
          %v871 = vmul.f32 1.0, %v870
          %v872 = vmul.f32 %v851, %v729
          %v873 = vmul.f32 %v832, %v852
          %v874 = vadd.f32 %v872, %v873
          %v875 = vtanh.pop %v874
          %v876 = vmul.f32 %v871, %v875
          %877 = vst [vmem:[#allocation2] sm:$0xff] %v876
          %878 = vmatpush.msra.mxu0 %v724
          %879 = vmatpush.msra.mxu0 %v720
          %880 = vmatpush.msra.mxu0 %v716
          %881 = vmatpush.msra.mxu0 %v712
          %882 = vmatpush.msra.mxu0 %v708
          %883 = vmatpush.msra.mxu0 %v704
          %884 = vmatpush.msra.mxu0 %v700
          %885 = vmatpush.msra.mxu0 %v696
          %886 = vmatpush.msra.mxu0 %v692
          %887 = vmatpush.msra.mxu0 %v688
          %888 = vmatpush.msra.mxu0 %v684
          %889 = vmatpush.msra.mxu0 %v680
          %890 = vmatpush.msra.mxu0 %v676
          %891 = vmatpush.msra.mxu0 %v672
          %892 = vmatpush.msra.mxu0 %v668
          %893 = vmatpush.msra.mxu0 %v664
          %894 = vmatmul.f32.gmra.mxu0 %v876
          %v895 = vpop.f32.mrf.mxu0
          %v896 = vadd.f32 0.0, %v895
          %897 = vdwg.mxu0
          %898 = vmatpush.msra.mxu0 %v725
          %899 = vmatpush.msra.mxu0 %v721
          %900 = vmatpush.msra.mxu0 %v717
          %901 = vmatpush.msra.mxu0 %v713
          %902 = vmatpush.msra.mxu0 %v709
          %903 = vmatpush.msra.mxu0 %v705
          %904 = vmatpush.msra.mxu0 %v701
          %905 = vmatpush.msra.mxu0 %v697
          %906 = vmatpush.msra.mxu0 %v693
          %907 = vmatpush.msra.mxu0 %v689
          %908 = vmatpush.msra.mxu0 %v685
          %909 = vmatpush.msra.mxu0 %v681
          %910 = vmatpush.msra.mxu0 %v677
          %911 = vmatpush.msra.mxu0 %v673
          %912 = vmatpush.msra.mxu0 %v669
          %913 = vmatpush.msra.mxu0 %v665
          %914 = vmatmul.f32.gmra.mxu0 %v876
          %v915 = vpop.f32.mrf.mxu0
          %v916 = vadd.f32 0.0, %v915
          %917 = vdwg.mxu0
          %918 = vmatpush.msra.mxu0 %v726
          %919 = vmatpush.msra.mxu0 %v722
          %920 = vmatpush.msra.mxu0 %v718
          %921 = vmatpush.msra.mxu0 %v714
          %922 = vmatpush.msra.mxu0 %v710
          %923 = vmatpush.msra.mxu0 %v706
          %924 = vmatpush.msra.mxu0 %v702
          %925 = vmatpush.msra.mxu0 %v698
          %926 = vmatpush.msra.mxu0 %v694
          %927 = vmatpush.msra.mxu0 %v690
          %928 = vmatpush.msra.mxu0 %v686
          %929 = vmatpush.msra.mxu0 %v682
          %930 = vmatpush.msra.mxu0 %v678
          %931 = vmatpush.msra.mxu0 %v674
          %932 = vmatpush.msra.mxu0 %v670
          %933 = vmatpush.msra.mxu0 %v666
          %934 = vmatmul.f32.gmra.mxu0 %v876
          %v935 = vpop.f32.mrf.mxu0
          %v936 = vadd.f32 0.0, %v935
          %937 = vdwg.mxu0
          %938 = vmatpush.msra.mxu0 %v727
          %939 = vmatpush.msra.mxu0 %v723
          %940 = vmatpush.msra.mxu0 %v719
          %941 = vmatpush.msra.mxu0 %v715
          %942 = vmatpush.msra.mxu0 %v711
          %943 = vmatpush.msra.mxu0 %v707
          %944 = vmatpush.msra.mxu0 %v703
          %945 = vmatpush.msra.mxu0 %v699
          %946 = vmatpush.msra.mxu0 %v695
          %947 = vmatpush.msra.mxu0 %v691
          %948 = vmatpush.msra.mxu0 %v687
          %949 = vmatpush.msra.mxu0 %v683
          %950 = vmatpush.msra.mxu0 %v679
          %951 = vmatpush.msra.mxu0 %v675
          %952 = vmatpush.msra.mxu0 %v671
          %953 = vmatpush.msra.mxu0 %v667
          %954 = vmatmul.f32.gmra.mxu0 %v876
          %v955 = vpop.f32.mrf.mxu0
          %v956 = vadd.f32 0.0, %v955
          %957 = vdwg.mxu0
          %v958 = vadd.f32 %v521, %v896
          %v959 = vadd.f32 %v562, %v916
          %v960 = vadd.f32 %v603, %v936
          %v961 = vadd.f32 %v644, %v956
          %v962 = vxor.u32 %v958, 2147483648
          %v963 = vmul.f32 %v962, 1.442695
          %v964 = vpow.pop %v963
          %v965 = vadd.f32 %v964, 1.0
          %v966 = vrcp.pop %v965
          %v967 = vmul.f32 %v965, %v966
          %v968 = vsub.f32 1.0, %v967
          %v969 = vmul.f32 %v966, %v968
          %v970 = vadd.f32 %v966, %v969
          %vm971 = vweird.f32 %v965
          %vm972 = vweird.f32 %v966
          %vm973 = vmor %vm971, %vm972
          %v974 = vsel %vm973, %v966, %v970
          %v975 = vand.u32 2147483647, %v965
          %vm976 = vcmp.eq.f32.partialorder %v975, 8.507059e+37
          %v977 = vand.u32 %v965, 2147483648
          %v978 = vor.u32 1.1754944e-38, %v977
          %v979 = vsel %vm976, %v978, %v974
          %v980 = vmul.f32 1.0, %v979
          %v981 = vxor.u32 %v959, 2147483648
          %v982 = vmul.f32 %v981, 1.442695
          %v983 = vpow.pop %v982
          %v984 = vadd.f32 %v983, 1.0
          %v985 = vrcp.pop %v984
          %v986 = vmul.f32 %v984, %v985
          %v987 = vsub.f32 1.0, %v986
          %v988 = vmul.f32 %v985, %v987
          %v989 = vadd.f32 %v985, %v988
          %vm990 = vweird.f32 %v984
          %vm991 = vweird.f32 %v985
          %vm992 = vmor %vm990, %vm991
          %v993 = vsel %vm992, %v985, %v989
          %v994 = vand.u32 2147483647, %v984
          %vm995 = vcmp.eq.f32.partialorder %v994, 8.507059e+37
          %v996 = vand.u32 %v984, 2147483648
          %v997 = vor.u32 1.1754944e-38, %v996
          %v998 = vsel %vm995, %v997, %v993
          %v999 = vmul.f32 1.0, %v998
          %v1000 = vtanh.pop %v960
          %v1001 = vxor.u32 %v961, 2147483648
          %v1002 = vmul.f32 %v1001, 1.442695
          %v1003 = vpow.pop %v1002
          %v1004 = vadd.f32 %v1003, 1.0
          %v1005 = vrcp.pop %v1004
          %v1006 = vmul.f32 %v1004, %v1005
          %v1007 = vsub.f32 1.0, %v1006
          %v1008 = vmul.f32 %v1005, %v1007
          %v1009 = vadd.f32 %v1005, %v1008
          %vm1010 = vweird.f32 %v1004
          %vm1011 = vweird.f32 %v1005
          %vm1012 = vmor %vm1010, %vm1011
          %v1013 = vsel %vm1012, %v1005, %v1009
          %v1014 = vand.u32 2147483647, %v1004
          %vm1015 = vcmp.eq.f32.partialorder %v1014, 8.507059e+37
          %v1016 = vand.u32 %v1004, 2147483648
          %v1017 = vor.u32 1.1754944e-38, %v1016
          %v1018 = vsel %vm1015, %v1017, %v1013
          %v1019 = vmul.f32 1.0, %v1018
          %v1020 = vmul.f32 %v999, %v874
          %v1021 = vmul.f32 %v980, %v1000
          %v1022 = vadd.f32 %v1020, %v1021
          %v1023 = vtanh.pop %v1022
          %v1024 = vmul.f32 %v1019, %v1023
          %s1025 = scalar_lea.vmem [#allocation2], 8
          %1026 = vst [vmem:[%s1025] sm:$0xff] %v1024
          %1027 = vmatpush.msra.mxu0 %v724
          %1028 = vmatpush.msra.mxu0 %v720
          %1029 = vmatpush.msra.mxu0 %v716
          %1030 = vmatpush.msra.mxu0 %v712
          %1031 = vmatpush.msra.mxu0 %v708
          %1032 = vmatpush.msra.mxu0 %v704
          %1033 = vmatpush.msra.mxu0 %v700
          %1034 = vmatpush.msra.mxu0 %v696
          %1035 = vmatpush.msra.mxu0 %v692
          %1036 = vmatpush.msra.mxu0 %v688
          %1037 = vmatpush.msra.mxu0 %v684
          %1038 = vmatpush.msra.mxu0 %v680
          %1039 = vmatpush.msra.mxu0 %v676
          %1040 = vmatpush.msra.mxu0 %v672
          %1041 = vmatpush.msra.mxu0 %v668
          %1042 = vmatpush.msra.mxu0 %v664
          %1043 = vmatmul.f32.gmra.mxu0 %v1024
          %v1044 = vpop.f32.mrf.mxu0
          %v1045 = vadd.f32 0.0, %v1044
          %1046 = vdwg.mxu0
          %1047 = vmatpush.msra.mxu0 %v725
          %1048 = vmatpush.msra.mxu0 %v721
          %1049 = vmatpush.msra.mxu0 %v717
          %1050 = vmatpush.msra.mxu0 %v713
          %1051 = vmatpush.msra.mxu0 %v709
          %1052 = vmatpush.msra.mxu0 %v705
          %1053 = vmatpush.msra.mxu0 %v701
          %1054 = vmatpush.msra.mxu0 %v697
          %1055 = vmatpush.msra.mxu0 %v693
          %1056 = vmatpush.msra.mxu0 %v689
          %1057 = vmatpush.msra.mxu0 %v685
          %1058 = vmatpush.msra.mxu0 %v681
          %1059 = vmatpush.msra.mxu0 %v677
          %1060 = vmatpush.msra.mxu0 %v673
          %1061 = vmatpush.msra.mxu0 %v669
          %1062 = vmatpush.msra.mxu0 %v665
          %1063 = vmatmul.f32.gmra.mxu0 %v1024
          %v1064 = vpop.f32.mrf.mxu0
          %v1065 = vadd.f32 0.0, %v1064
          %1066 = vdwg.mxu0
          %1067 = vmatpush.msra.mxu0 %v726
          %1068 = vmatpush.msra.mxu0 %v722
          %1069 = vmatpush.msra.mxu0 %v718
          %1070 = vmatpush.msra.mxu0 %v714
          %1071 = vmatpush.msra.mxu0 %v710
          %1072 = vmatpush.msra.mxu0 %v706
          %1073 = vmatpush.msra.mxu0 %v702
          %1074 = vmatpush.msra.mxu0 %v698
          %1075 = vmatpush.msra.mxu0 %v694
          %1076 = vmatpush.msra.mxu0 %v690
          %1077 = vmatpush.msra.mxu0 %v686
          %1078 = vmatpush.msra.mxu0 %v682
          %1079 = vmatpush.msra.mxu0 %v678
          %1080 = vmatpush.msra.mxu0 %v674
          %1081 = vmatpush.msra.mxu0 %v670
          %1082 = vmatpush.msra.mxu0 %v666
          %1083 = vmatmul.f32.gmra.mxu0 %v1024
          %v1084 = vpop.f32.mrf.mxu0
          %v1085 = vadd.f32 0.0, %v1084
          %1086 = vdwg.mxu0
          %1087 = vmatpush.msra.mxu0 %v727
          %1088 = vmatpush.msra.mxu0 %v723
          %1089 = vmatpush.msra.mxu0 %v719
          %1090 = vmatpush.msra.mxu0 %v715
          %1091 = vmatpush.msra.mxu0 %v711
          %1092 = vmatpush.msra.mxu0 %v707
          %1093 = vmatpush.msra.mxu0 %v703
          %1094 = vmatpush.msra.mxu0 %v699
          %1095 = vmatpush.msra.mxu0 %v695
          %1096 = vmatpush.msra.mxu0 %v691
          %1097 = vmatpush.msra.mxu0 %v687
          %1098 = vmatpush.msra.mxu0 %v683
          %1099 = vmatpush.msra.mxu0 %v679
          %1100 = vmatpush.msra.mxu0 %v675
          %1101 = vmatpush.msra.mxu0 %v671
          %1102 = vmatpush.msra.mxu0 %v667
          %1103 = vmatmul.f32.gmra.mxu0 %v1024
          %v1104 = vpop.f32.mrf.mxu0
          %v1105 = vadd.f32 0.0, %v1104
          %1106 = vdwg.mxu0
          %v1107 = vadd.f32 %v524, %v1045
          %v1108 = vadd.f32 %v565, %v1065
          %v1109 = vadd.f32 %v606, %v1085
          %v1110 = vadd.f32 %v647, %v1105
          %v1111 = vxor.u32 %v1107, 2147483648
          %v1112 = vmul.f32 %v1111, 1.442695
          %v1113 = vpow.pop %v1112
          %v1114 = vadd.f32 %v1113, 1.0
          %v1115 = vrcp.pop %v1114
          %v1116 = vmul.f32 %v1114, %v1115
          %v1117 = vsub.f32 1.0, %v1116
          %v1118 = vmul.f32 %v1115, %v1117
          %v1119 = vadd.f32 %v1115, %v1118
          %vm1120 = vweird.f32 %v1114
          %vm1121 = vweird.f32 %v1115
          %vm1122 = vmor %vm1120, %vm1121
          %v1123 = vsel %vm1122, %v1115, %v1119
          %v1124 = vand.u32 2147483647, %v1114
          %vm1125 = vcmp.eq.f32.partialorder %v1124, 8.507059e+37
          %v1126 = vand.u32 %v1114, 2147483648
          %v1127 = vor.u32 1.1754944e-38, %v1126
          %v1128 = vsel %vm1125, %v1127, %v1123
          %v1129 = vmul.f32 1.0, %v1128
          %v1130 = vxor.u32 %v1108, 2147483648
          %v1131 = vmul.f32 %v1130, 1.442695
          %v1132 = vpow.pop %v1131
          %v1133 = vadd.f32 %v1132, 1.0
          %v1134 = vrcp.pop %v1133
          %v1135 = vmul.f32 %v1133, %v1134
          %v1136 = vsub.f32 1.0, %v1135
          %v1137 = vmul.f32 %v1134, %v1136
          %v1138 = vadd.f32 %v1134, %v1137
          %vm1139 = vweird.f32 %v1133
          %vm1140 = vweird.f32 %v1134
          %vm1141 = vmor %vm1139, %vm1140
          %v1142 = vsel %vm1141, %v1134, %v1138
          %v1143 = vand.u32 2147483647, %v1133
          %vm1144 = vcmp.eq.f32.partialorder %v1143, 8.507059e+37
          %v1145 = vand.u32 %v1133, 2147483648
          %v1146 = vor.u32 1.1754944e-38, %v1145
          %v1147 = vsel %vm1144, %v1146, %v1142
          %v1148 = vmul.f32 1.0, %v1147
          %v1149 = vtanh.pop %v1109
          %v1150 = vxor.u32 %v1110, 2147483648
          %v1151 = vmul.f32 %v1150, 1.442695
          %v1152 = vpow.pop %v1151
          %v1153 = vadd.f32 %v1152, 1.0
          %v1154 = vrcp.pop %v1153
          %v1155 = vmul.f32 %v1153, %v1154
          %v1156 = vsub.f32 1.0, %v1155
          %v1157 = vmul.f32 %v1154, %v1156
          %v1158 = vadd.f32 %v1154, %v1157
          %vm1159 = vweird.f32 %v1153
          %vm1160 = vweird.f32 %v1154
          %vm1161 = vmor %vm1159, %vm1160
          %v1162 = vsel %vm1161, %v1154, %v1158
          %v1163 = vand.u32 2147483647, %v1153
          %vm1164 = vcmp.eq.f32.partialorder %v1163, 8.507059e+37
          %v1165 = vand.u32 %v1153, 2147483648
          %v1166 = vor.u32 1.1754944e-38, %v1165
          %v1167 = vsel %vm1164, %v1166, %v1162
          %v1168 = vmul.f32 1.0, %v1167
          %v1169 = vmul.f32 %v1148, %v1022
          %v1170 = vmul.f32 %v1129, %v1149
          %v1171 = vadd.f32 %v1169, %v1170
          %v1172 = vtanh.pop %v1171
          %v1173 = vmul.f32 %v1168, %v1172
          %s1174 = scalar_lea.vmem [#allocation2], 16
          %1175 = vst [vmem:[%s1174] sm:$0xff] %v1173
          %1176 = vmatpush.msra.mxu0 %v724
          %1177 = vmatpush.msra.mxu0 %v720
          %1178 = vmatpush.msra.mxu0 %v716
          %1179 = vmatpush.msra.mxu0 %v712
          %1180 = vmatpush.msra.mxu0 %v708
          %1181 = vmatpush.msra.mxu0 %v704
          %1182 = vmatpush.msra.mxu0 %v700
          %1183 = vmatpush.msra.mxu0 %v696
          %1184 = vmatpush.msra.mxu0 %v692
          %1185 = vmatpush.msra.mxu0 %v688
          %1186 = vmatpush.msra.mxu0 %v684
          %1187 = vmatpush.msra.mxu0 %v680
          %1188 = vmatpush.msra.mxu0 %v676
          %1189 = vmatpush.msra.mxu0 %v672
          %1190 = vmatpush.msra.mxu0 %v668
          %1191 = vmatpush.msra.mxu0 %v664
          %1192 = vmatmul.f32.gmra.mxu0 %v1173
          %v1193 = vpop.f32.mrf.mxu0
          %v1194 = vadd.f32 0.0, %v1193
          %1195 = vdwg.mxu0
          %1196 = vmatpush.msra.mxu0 %v725
          %1197 = vmatpush.msra.mxu0 %v721
          %1198 = vmatpush.msra.mxu0 %v717
          %1199 = vmatpush.msra.mxu0 %v713
          %1200 = vmatpush.msra.mxu0 %v709
          %1201 = vmatpush.msra.mxu0 %v705
          %1202 = vmatpush.msra.mxu0 %v701
          %1203 = vmatpush.msra.mxu0 %v697
          %1204 = vmatpush.msra.mxu0 %v693
          %1205 = vmatpush.msra.mxu0 %v689
          %1206 = vmatpush.msra.mxu0 %v685
          %1207 = vmatpush.msra.mxu0 %v681
          %1208 = vmatpush.msra.mxu0 %v677
          %1209 = vmatpush.msra.mxu0 %v673
          %1210 = vmatpush.msra.mxu0 %v669
          %1211 = vmatpush.msra.mxu0 %v665
          %1212 = vmatmul.f32.gmra.mxu0 %v1173
          %v1213 = vpop.f32.mrf.mxu0
          %v1214 = vadd.f32 0.0, %v1213
          %1215 = vdwg.mxu0
          %1216 = vmatpush.msra.mxu0 %v726
          %1217 = vmatpush.msra.mxu0 %v722
          %1218 = vmatpush.msra.mxu0 %v718
          %1219 = vmatpush.msra.mxu0 %v714
          %1220 = vmatpush.msra.mxu0 %v710
          %1221 = vmatpush.msra.mxu0 %v706
          %1222 = vmatpush.msra.mxu0 %v702
          %1223 = vmatpush.msra.mxu0 %v698
          %1224 = vmatpush.msra.mxu0 %v694
          %1225 = vmatpush.msra.mxu0 %v690
          %1226 = vmatpush.msra.mxu0 %v686
          %1227 = vmatpush.msra.mxu0 %v682
          %1228 = vmatpush.msra.mxu0 %v678
          %1229 = vmatpush.msra.mxu0 %v674
          %1230 = vmatpush.msra.mxu0 %v670
          %1231 = vmatpush.msra.mxu0 %v666
          %1232 = vmatmul.f32.gmra.mxu0 %v1173
          %v1233 = vpop.f32.mrf.mxu0
          %v1234 = vadd.f32 0.0, %v1233
          %1235 = vdwg.mxu0
          %1236 = vmatpush.msra.mxu0 %v727
          %1237 = vmatpush.msra.mxu0 %v723
          %1238 = vmatpush.msra.mxu0 %v719
          %1239 = vmatpush.msra.mxu0 %v715
          %1240 = vmatpush.msra.mxu0 %v711
          %1241 = vmatpush.msra.mxu0 %v707
          %1242 = vmatpush.msra.mxu0 %v703
          %1243 = vmatpush.msra.mxu0 %v699
          %1244 = vmatpush.msra.mxu0 %v695
          %1245 = vmatpush.msra.mxu0 %v691
          %1246 = vmatpush.msra.mxu0 %v687
          %1247 = vmatpush.msra.mxu0 %v683
          %1248 = vmatpush.msra.mxu0 %v679
          %1249 = vmatpush.msra.mxu0 %v675
          %1250 = vmatpush.msra.mxu0 %v671
          %1251 = vmatpush.msra.mxu0 %v667
          %1252 = vmatmul.f32.gmra.mxu0 %v1173
          %v1253 = vpop.f32.mrf.mxu0
          %v1254 = vadd.f32 0.0, %v1253
          %1255 = vdwg.mxu0
          %v1256 = vadd.f32 %v527, %v1194
          %v1257 = vadd.f32 %v568, %v1214
          %v1258 = vadd.f32 %v609, %v1234
          %v1259 = vadd.f32 %v650, %v1254
          %v1260 = vxor.u32 %v1256, 2147483648
          %v1261 = vmul.f32 %v1260, 1.442695
          %v1262 = vpow.pop %v1261
          %v1263 = vadd.f32 %v1262, 1.0
          %v1264 = vrcp.pop %v1263
          %v1265 = vmul.f32 %v1263, %v1264
          %v1266 = vsub.f32 1.0, %v1265
          %v1267 = vmul.f32 %v1264, %v1266
          %v1268 = vadd.f32 %v1264, %v1267
          %vm1269 = vweird.f32 %v1263
          %vm1270 = vweird.f32 %v1264
          %vm1271 = vmor %vm1269, %vm1270
          %v1272 = vsel %vm1271, %v1264, %v1268
          %v1273 = vand.u32 2147483647, %v1263
          %vm1274 = vcmp.eq.f32.partialorder %v1273, 8.507059e+37
          %v1275 = vand.u32 %v1263, 2147483648
          %v1276 = vor.u32 1.1754944e-38, %v1275
          %v1277 = vsel %vm1274, %v1276, %v1272
          %v1278 = vmul.f32 1.0, %v1277
          %v1279 = vxor.u32 %v1257, 2147483648
          %v1280 = vmul.f32 %v1279, 1.442695
          %v1281 = vpow.pop %v1280
          %v1282 = vadd.f32 %v1281, 1.0
          %v1283 = vrcp.pop %v1282
          %v1284 = vmul.f32 %v1282, %v1283
          %v1285 = vsub.f32 1.0, %v1284
          %v1286 = vmul.f32 %v1283, %v1285
          %v1287 = vadd.f32 %v1283, %v1286
          %vm1288 = vweird.f32 %v1282
          %vm1289 = vweird.f32 %v1283
          %vm1290 = vmor %vm1288, %vm1289
          %v1291 = vsel %vm1290, %v1283, %v1287
          %v1292 = vand.u32 2147483647, %v1282
          %vm1293 = vcmp.eq.f32.partialorder %v1292, 8.507059e+37
          %v1294 = vand.u32 %v1282, 2147483648
          %v1295 = vor.u32 1.1754944e-38, %v1294
          %v1296 = vsel %vm1293, %v1295, %v1291
          %v1297 = vmul.f32 1.0, %v1296
          %v1298 = vtanh.pop %v1258
          %v1299 = vxor.u32 %v1259, 2147483648
          %v1300 = vmul.f32 %v1299, 1.442695
          %v1301 = vpow.pop %v1300
          %v1302 = vadd.f32 %v1301, 1.0
          %v1303 = vrcp.pop %v1302
          %v1304 = vmul.f32 %v1302, %v1303
          %v1305 = vsub.f32 1.0, %v1304
          %v1306 = vmul.f32 %v1303, %v1305
          %v1307 = vadd.f32 %v1303, %v1306
          %vm1308 = vweird.f32 %v1302
          %vm1309 = vweird.f32 %v1303
          %vm1310 = vmor %vm1308, %vm1309
          %v1311 = vsel %vm1310, %v1303, %v1307
          %v1312 = vand.u32 2147483647, %v1302
          %vm1313 = vcmp.eq.f32.partialorder %v1312, 8.507059e+37
          %v1314 = vand.u32 %v1302, 2147483648
          %v1315 = vor.u32 1.1754944e-38, %v1314
          %v1316 = vsel %vm1313, %v1315, %v1311
          %v1317 = vmul.f32 1.0, %v1316
          %v1318 = vmul.f32 %v1297, %v1171
          %v1319 = vmul.f32 %v1278, %v1298
          %v1320 = vadd.f32 %v1318, %v1319
          %v1321 = vtanh.pop %v1320
          %v1322 = vmul.f32 %v1317, %v1321
          %s1323 = scalar_lea.vmem [#allocation2], 24
          %1324 = vst [vmem:[%s1323] sm:$0xff] %v1322
          %1325 = vmatpush.msra.mxu0 %v724
          %1326 = vmatpush.msra.mxu0 %v720
          %1327 = vmatpush.msra.mxu0 %v716
          %1328 = vmatpush.msra.mxu0 %v712
          %1329 = vmatpush.msra.mxu0 %v708
          %1330 = vmatpush.msra.mxu0 %v704
          %1331 = vmatpush.msra.mxu0 %v700
          %1332 = vmatpush.msra.mxu0 %v696
          %1333 = vmatpush.msra.mxu0 %v692
          %1334 = vmatpush.msra.mxu0 %v688
          %1335 = vmatpush.msra.mxu0 %v684
          %1336 = vmatpush.msra.mxu0 %v680
          %1337 = vmatpush.msra.mxu0 %v676
          %1338 = vmatpush.msra.mxu0 %v672
          %1339 = vmatpush.msra.mxu0 %v668
          %1340 = vmatpush.msra.mxu0 %v664
          %1341 = vmatmul.f32.gmra.mxu0 %v1322
          %v1342 = vpop.f32.mrf.mxu0
          %v1343 = vadd.f32 0.0, %v1342
          %1344 = vdwg.mxu0
          %1345 = vmatpush.msra.mxu0 %v725
          %1346 = vmatpush.msra.mxu0 %v721
          %1347 = vmatpush.msra.mxu0 %v717
          %1348 = vmatpush.msra.mxu0 %v713
          %1349 = vmatpush.msra.mxu0 %v709
          %1350 = vmatpush.msra.mxu0 %v705
          %1351 = vmatpush.msra.mxu0 %v701
          %1352 = vmatpush.msra.mxu0 %v697
          %1353 = vmatpush.msra.mxu0 %v693
          %1354 = vmatpush.msra.mxu0 %v689
          %1355 = vmatpush.msra.mxu0 %v685
          %1356 = vmatpush.msra.mxu0 %v681
          %1357 = vmatpush.msra.mxu0 %v677
          %1358 = vmatpush.msra.mxu0 %v673
          %1359 = vmatpush.msra.mxu0 %v669
          %1360 = vmatpush.msra.mxu0 %v665
          %1361 = vmatmul.f32.gmra.mxu0 %v1322
          %v1362 = vpop.f32.mrf.mxu0
          %v1363 = vadd.f32 0.0, %v1362
          %1364 = vdwg.mxu0
          %1365 = vmatpush.msra.mxu0 %v726
          %1366 = vmatpush.msra.mxu0 %v722
          %1367 = vmatpush.msra.mxu0 %v718
          %1368 = vmatpush.msra.mxu0 %v714
          %1369 = vmatpush.msra.mxu0 %v710
          %1370 = vmatpush.msra.mxu0 %v706
          %1371 = vmatpush.msra.mxu0 %v702
          %1372 = vmatpush.msra.mxu0 %v698
          %1373 = vmatpush.msra.mxu0 %v694
          %1374 = vmatpush.msra.mxu0 %v690
          %1375 = vmatpush.msra.mxu0 %v686
          %1376 = vmatpush.msra.mxu0 %v682
          %1377 = vmatpush.msra.mxu0 %v678
          %1378 = vmatpush.msra.mxu0 %v674
          %1379 = vmatpush.msra.mxu0 %v670
          %1380 = vmatpush.msra.mxu0 %v666
          %1381 = vmatmul.f32.gmra.mxu0 %v1322
          %v1382 = vpop.f32.mrf.mxu0
          %v1383 = vadd.f32 0.0, %v1382
          %1384 = vdwg.mxu0
          %1385 = vmatpush.msra.mxu0 %v727
          %1386 = vmatpush.msra.mxu0 %v723
          %1387 = vmatpush.msra.mxu0 %v719
          %1388 = vmatpush.msra.mxu0 %v715
          %1389 = vmatpush.msra.mxu0 %v711
          %1390 = vmatpush.msra.mxu0 %v707
          %1391 = vmatpush.msra.mxu0 %v703
          %1392 = vmatpush.msra.mxu0 %v699
          %1393 = vmatpush.msra.mxu0 %v695
          %1394 = vmatpush.msra.mxu0 %v691
          %1395 = vmatpush.msra.mxu0 %v687
          %1396 = vmatpush.msra.mxu0 %v683
          %1397 = vmatpush.msra.mxu0 %v679
          %1398 = vmatpush.msra.mxu0 %v675
          %1399 = vmatpush.msra.mxu0 %v671
          %1400 = vmatpush.msra.mxu0 %v667
          %1401 = vmatmul.f32.gmra.mxu0 %v1322
          %v1402 = vpop.f32.mrf.mxu0
          %v1403 = vadd.f32 0.0, %v1402
          %1404 = vdwg.mxu0
          %v1405 = vadd.f32 %v530, %v1343
          %v1406 = vadd.f32 %v571, %v1363
          %v1407 = vadd.f32 %v612, %v1383
          %v1408 = vadd.f32 %v653, %v1403
          %v1409 = vxor.u32 %v1405, 2147483648
          %v1410 = vmul.f32 %v1409, 1.442695
          %v1411 = vpow.pop %v1410
          %v1412 = vadd.f32 %v1411, 1.0
          %v1413 = vrcp.pop %v1412
          %v1414 = vmul.f32 %v1412, %v1413
          %v1415 = vsub.f32 1.0, %v1414
          %v1416 = vmul.f32 %v1413, %v1415
          %v1417 = vadd.f32 %v1413, %v1416
          %vm1418 = vweird.f32 %v1412
          %vm1419 = vweird.f32 %v1413
          %vm1420 = vmor %vm1418, %vm1419
          %v1421 = vsel %vm1420, %v1413, %v1417
          %v1422 = vand.u32 2147483647, %v1412
          %vm1423 = vcmp.eq.f32.partialorder %v1422, 8.507059e+37
          %v1424 = vand.u32 %v1412, 2147483648
          %v1425 = vor.u32 1.1754944e-38, %v1424
          %v1426 = vsel %vm1423, %v1425, %v1421
          %v1427 = vmul.f32 1.0, %v1426
          %v1428 = vxor.u32 %v1406, 2147483648
          %v1429 = vmul.f32 %v1428, 1.442695
          %v1430 = vpow.pop %v1429
          %v1431 = vadd.f32 %v1430, 1.0
          %v1432 = vrcp.pop %v1431
          %v1433 = vmul.f32 %v1431, %v1432
          %v1434 = vsub.f32 1.0, %v1433
          %v1435 = vmul.f32 %v1432, %v1434
          %v1436 = vadd.f32 %v1432, %v1435
          %vm1437 = vweird.f32 %v1431
          %vm1438 = vweird.f32 %v1432
          %vm1439 = vmor %vm1437, %vm1438
          %v1440 = vsel %vm1439, %v1432, %v1436
          %v1441 = vand.u32 2147483647, %v1431
          %vm1442 = vcmp.eq.f32.partialorder %v1441, 8.507059e+37
          %v1443 = vand.u32 %v1431, 2147483648
          %v1444 = vor.u32 1.1754944e-38, %v1443
          %v1445 = vsel %vm1442, %v1444, %v1440
          %v1446 = vmul.f32 1.0, %v1445
          %v1447 = vtanh.pop %v1407
          %v1448 = vxor.u32 %v1408, 2147483648
          %v1449 = vmul.f32 %v1448, 1.442695
          %v1450 = vpow.pop %v1449
          %v1451 = vadd.f32 %v1450, 1.0
          %v1452 = vrcp.pop %v1451
          %v1453 = vmul.f32 %v1451, %v1452
          %v1454 = vsub.f32 1.0, %v1453
          %v1455 = vmul.f32 %v1452, %v1454
          %v1456 = vadd.f32 %v1452, %v1455
          %vm1457 = vweird.f32 %v1451
          %vm1458 = vweird.f32 %v1452
          %vm1459 = vmor %vm1457, %vm1458
          %v1460 = vsel %vm1459, %v1452, %v1456
          %v1461 = vand.u32 2147483647, %v1451
          %vm1462 = vcmp.eq.f32.partialorder %v1461, 8.507059e+37
          %v1463 = vand.u32 %v1451, 2147483648
          %v1464 = vor.u32 1.1754944e-38, %v1463
          %v1465 = vsel %vm1462, %v1464, %v1460
          %v1466 = vmul.f32 1.0, %v1465
          %v1467 = vmul.f32 %v1446, %v1320
          %v1468 = vmul.f32 %v1427, %v1447
          %v1469 = vadd.f32 %v1467, %v1468
          %v1470 = vtanh.pop %v1469
          %v1471 = vmul.f32 %v1466, %v1470
          %s1472 = scalar_lea.vmem [#allocation2], 32
          %1473 = vst [vmem:[%s1472] sm:$0xff] %v1471
          %1474 = vmatpush.msra.mxu0 %v724
          %1475 = vmatpush.msra.mxu0 %v720
          %1476 = vmatpush.msra.mxu0 %v716
          %1477 = vmatpush.msra.mxu0 %v712
          %1478 = vmatpush.msra.mxu0 %v708
          %1479 = vmatpush.msra.mxu0 %v704
          %1480 = vmatpush.msra.mxu0 %v700
          %1481 = vmatpush.msra.mxu0 %v696
          %1482 = vmatpush.msra.mxu0 %v692
          %1483 = vmatpush.msra.mxu0 %v688
          %1484 = vmatpush.msra.mxu0 %v684
          %1485 = vmatpush.msra.mxu0 %v680
          %1486 = vmatpush.msra.mxu0 %v676
          %1487 = vmatpush.msra.mxu0 %v672
          %1488 = vmatpush.msra.mxu0 %v668
          %1489 = vmatpush.msra.mxu0 %v664
          %1490 = vmatmul.f32.gmra.mxu0 %v1471
          %v1491 = vpop.f32.mrf.mxu0
          %v1492 = vadd.f32 0.0, %v1491
          %1493 = vdwg.mxu0
          %1494 = vmatpush.msra.mxu0 %v725
          %1495 = vmatpush.msra.mxu0 %v721
          %1496 = vmatpush.msra.mxu0 %v717
          %1497 = vmatpush.msra.mxu0 %v713
          %1498 = vmatpush.msra.mxu0 %v709
          %1499 = vmatpush.msra.mxu0 %v705
          %1500 = vmatpush.msra.mxu0 %v701
          %1501 = vmatpush.msra.mxu0 %v697
          %1502 = vmatpush.msra.mxu0 %v693
          %1503 = vmatpush.msra.mxu0 %v689
          %1504 = vmatpush.msra.mxu0 %v685
          %1505 = vmatpush.msra.mxu0 %v681
          %1506 = vmatpush.msra.mxu0 %v677
          %1507 = vmatpush.msra.mxu0 %v673
          %1508 = vmatpush.msra.mxu0 %v669
          %1509 = vmatpush.msra.mxu0 %v665
          %1510 = vmatmul.f32.gmra.mxu0 %v1471
          %v1511 = vpop.f32.mrf.mxu0
          %v1512 = vadd.f32 0.0, %v1511
          %1513 = vdwg.mxu0
          %1514 = vmatpush.msra.mxu0 %v726
          %1515 = vmatpush.msra.mxu0 %v722
          %1516 = vmatpush.msra.mxu0 %v718
          %1517 = vmatpush.msra.mxu0 %v714
          %1518 = vmatpush.msra.mxu0 %v710
          %1519 = vmatpush.msra.mxu0 %v706
          %1520 = vmatpush.msra.mxu0 %v702
          %1521 = vmatpush.msra.mxu0 %v698
          %1522 = vmatpush.msra.mxu0 %v694
          %1523 = vmatpush.msra.mxu0 %v690
          %1524 = vmatpush.msra.mxu0 %v686
          %1525 = vmatpush.msra.mxu0 %v682
          %1526 = vmatpush.msra.mxu0 %v678
          %1527 = vmatpush.msra.mxu0 %v674
          %1528 = vmatpush.msra.mxu0 %v670
          %1529 = vmatpush.msra.mxu0 %v666
          %1530 = vmatmul.f32.gmra.mxu0 %v1471
          %v1531 = vpop.f32.mrf.mxu0
          %v1532 = vadd.f32 0.0, %v1531
          %1533 = vdwg.mxu0
          %1534 = vmatpush.msra.mxu0 %v727
          %1535 = vmatpush.msra.mxu0 %v723
          %1536 = vmatpush.msra.mxu0 %v719
          %1537 = vmatpush.msra.mxu0 %v715
          %1538 = vmatpush.msra.mxu0 %v711
          %1539 = vmatpush.msra.mxu0 %v707
          %1540 = vmatpush.msra.mxu0 %v703
          %1541 = vmatpush.msra.mxu0 %v699
          %1542 = vmatpush.msra.mxu0 %v695
          %1543 = vmatpush.msra.mxu0 %v691
          %1544 = vmatpush.msra.mxu0 %v687
          %1545 = vmatpush.msra.mxu0 %v683
          %1546 = vmatpush.msra.mxu0 %v679
          %1547 = vmatpush.msra.mxu0 %v675
          %1548 = vmatpush.msra.mxu0 %v671
          %1549 = vmatpush.msra.mxu0 %v667
          %1550 = vmatmul.f32.gmra.mxu0 %v1471
          %v1551 = vpop.f32.mrf.mxu0
          %v1552 = vadd.f32 0.0, %v1551
          %1553 = vdwg.mxu0
          %v1554 = vadd.f32 %v533, %v1492
          %v1555 = vadd.f32 %v574, %v1512
          %v1556 = vadd.f32 %v615, %v1532
          %v1557 = vadd.f32 %v656, %v1552
          %v1558 = vxor.u32 %v1554, 2147483648
          %v1559 = vmul.f32 %v1558, 1.442695
          %v1560 = vpow.pop %v1559
          %v1561 = vadd.f32 %v1560, 1.0
          %v1562 = vrcp.pop %v1561
          %v1563 = vmul.f32 %v1561, %v1562
          %v1564 = vsub.f32 1.0, %v1563
          %v1565 = vmul.f32 %v1562, %v1564
          %v1566 = vadd.f32 %v1562, %v1565
          %vm1567 = vweird.f32 %v1561
          %vm1568 = vweird.f32 %v1562
          %vm1569 = vmor %vm1567, %vm1568
          %v1570 = vsel %vm1569, %v1562, %v1566
          %v1571 = vand.u32 2147483647, %v1561
          %vm1572 = vcmp.eq.f32.partialorder %v1571, 8.507059e+37
          %v1573 = vand.u32 %v1561, 2147483648
          %v1574 = vor.u32 1.1754944e-38, %v1573
          %v1575 = vsel %vm1572, %v1574, %v1570
          %v1576 = vmul.f32 1.0, %v1575
          %v1577 = vxor.u32 %v1555, 2147483648
          %v1578 = vmul.f32 %v1577, 1.442695
          %v1579 = vpow.pop %v1578
          %v1580 = vadd.f32 %v1579, 1.0
          %v1581 = vrcp.pop %v1580
          %v1582 = vmul.f32 %v1580, %v1581
          %v1583 = vsub.f32 1.0, %v1582
          %v1584 = vmul.f32 %v1581, %v1583
          %v1585 = vadd.f32 %v1581, %v1584
          %vm1586 = vweird.f32 %v1580
          %vm1587 = vweird.f32 %v1581
          %vm1588 = vmor %vm1586, %vm1587
          %v1589 = vsel %vm1588, %v1581, %v1585
          %v1590 = vand.u32 2147483647, %v1580
          %vm1591 = vcmp.eq.f32.partialorder %v1590, 8.507059e+37
          %v1592 = vand.u32 %v1580, 2147483648
          %v1593 = vor.u32 1.1754944e-38, %v1592
          %v1594 = vsel %vm1591, %v1593, %v1589
          %v1595 = vmul.f32 1.0, %v1594
          %v1596 = vtanh.pop %v1556
          %v1597 = vxor.u32 %v1557, 2147483648
          %v1598 = vmul.f32 %v1597, 1.442695
          %v1599 = vpow.pop %v1598
          %v1600 = vadd.f32 %v1599, 1.0
          %v1601 = vrcp.pop %v1600
          %v1602 = vmul.f32 %v1600, %v1601
          %v1603 = vsub.f32 1.0, %v1602
          %v1604 = vmul.f32 %v1601, %v1603
          %v1605 = vadd.f32 %v1601, %v1604
          %vm1606 = vweird.f32 %v1600
          %vm1607 = vweird.f32 %v1601
          %vm1608 = vmor %vm1606, %vm1607
          %v1609 = vsel %vm1608, %v1601, %v1605
          %v1610 = vand.u32 2147483647, %v1600
          %vm1611 = vcmp.eq.f32.partialorder %v1610, 8.507059e+37
          %v1612 = vand.u32 %v1600, 2147483648
          %v1613 = vor.u32 1.1754944e-38, %v1612
          %v1614 = vsel %vm1611, %v1613, %v1609
          %v1615 = vmul.f32 1.0, %v1614
          %v1616 = vmul.f32 %v1595, %v1469
          %v1617 = vmul.f32 %v1576, %v1596
          %v1618 = vadd.f32 %v1616, %v1617
          %v1619 = vtanh.pop %v1618
          %v1620 = vmul.f32 %v1615, %v1619
          %s1621 = scalar_lea.vmem [#allocation2], 40
          %1622 = vst [vmem:[%s1621] sm:$0xff] %v1620
          %1623 = vmatpush.msra.mxu0 %v724
          %1624 = vmatpush.msra.mxu0 %v720
          %1625 = vmatpush.msra.mxu0 %v716
          %1626 = vmatpush.msra.mxu0 %v712
          %1627 = vmatpush.msra.mxu0 %v708
          %1628 = vmatpush.msra.mxu0 %v704
          %1629 = vmatpush.msra.mxu0 %v700
          %1630 = vmatpush.msra.mxu0 %v696
          %1631 = vmatpush.msra.mxu0 %v692
          %1632 = vmatpush.msra.mxu0 %v688
          %1633 = vmatpush.msra.mxu0 %v684
          %1634 = vmatpush.msra.mxu0 %v680
          %1635 = vmatpush.msra.mxu0 %v676
          %1636 = vmatpush.msra.mxu0 %v672
          %1637 = vmatpush.msra.mxu0 %v668
          %1638 = vmatpush.msra.mxu0 %v664
          %1639 = vmatmul.f32.gmra.mxu0 %v1620
          %v1640 = vpop.f32.mrf.mxu0
          %v1641 = vadd.f32 0.0, %v1640
          %1642 = vdwg.mxu0
          %1643 = vmatpush.msra.mxu0 %v725
          %1644 = vmatpush.msra.mxu0 %v721
          %1645 = vmatpush.msra.mxu0 %v717
          %1646 = vmatpush.msra.mxu0 %v713
          %1647 = vmatpush.msra.mxu0 %v709
          %1648 = vmatpush.msra.mxu0 %v705
          %1649 = vmatpush.msra.mxu0 %v701
          %1650 = vmatpush.msra.mxu0 %v697
          %1651 = vmatpush.msra.mxu0 %v693
          %1652 = vmatpush.msra.mxu0 %v689
          %1653 = vmatpush.msra.mxu0 %v685
          %1654 = vmatpush.msra.mxu0 %v681
          %1655 = vmatpush.msra.mxu0 %v677
          %1656 = vmatpush.msra.mxu0 %v673
          %1657 = vmatpush.msra.mxu0 %v669
          %1658 = vmatpush.msra.mxu0 %v665
          %1659 = vmatmul.f32.gmra.mxu0 %v1620
          %v1660 = vpop.f32.mrf.mxu0
          %v1661 = vadd.f32 0.0, %v1660
          %1662 = vdwg.mxu0
          %1663 = vmatpush.msra.mxu0 %v726
          %1664 = vmatpush.msra.mxu0 %v722
          %1665 = vmatpush.msra.mxu0 %v718
          %1666 = vmatpush.msra.mxu0 %v714
          %1667 = vmatpush.msra.mxu0 %v710
          %1668 = vmatpush.msra.mxu0 %v706
          %1669 = vmatpush.msra.mxu0 %v702
          %1670 = vmatpush.msra.mxu0 %v698
          %1671 = vmatpush.msra.mxu0 %v694
          %1672 = vmatpush.msra.mxu0 %v690
          %1673 = vmatpush.msra.mxu0 %v686
          %1674 = vmatpush.msra.mxu0 %v682
          %1675 = vmatpush.msra.mxu0 %v678
          %1676 = vmatpush.msra.mxu0 %v674
          %1677 = vmatpush.msra.mxu0 %v670
          %1678 = vmatpush.msra.mxu0 %v666
          %1679 = vmatmul.f32.gmra.mxu0 %v1620
          %v1680 = vpop.f32.mrf.mxu0
          %v1681 = vadd.f32 0.0, %v1680
          %1682 = vdwg.mxu0
          %1683 = vmatpush.msra.mxu0 %v727
          %1684 = vmatpush.msra.mxu0 %v723
          %1685 = vmatpush.msra.mxu0 %v719
          %1686 = vmatpush.msra.mxu0 %v715
          %1687 = vmatpush.msra.mxu0 %v711
          %1688 = vmatpush.msra.mxu0 %v707
          %1689 = vmatpush.msra.mxu0 %v703
          %1690 = vmatpush.msra.mxu0 %v699
          %1691 = vmatpush.msra.mxu0 %v695
          %1692 = vmatpush.msra.mxu0 %v691
          %1693 = vmatpush.msra.mxu0 %v687
          %1694 = vmatpush.msra.mxu0 %v683
          %1695 = vmatpush.msra.mxu0 %v679
          %1696 = vmatpush.msra.mxu0 %v675
          %1697 = vmatpush.msra.mxu0 %v671
          %1698 = vmatpush.msra.mxu0 %v667
          %1699 = vmatmul.f32.gmra.mxu0 %v1620
          %v1700 = vpop.f32.mrf.mxu0
          %v1701 = vadd.f32 0.0, %v1700
          %1702 = vdwg.mxu0
          %v1703 = vadd.f32 %v536, %v1641
          %v1704 = vadd.f32 %v577, %v1661
          %v1705 = vadd.f32 %v618, %v1681
          %v1706 = vadd.f32 %v659, %v1701
          %v1707 = vxor.u32 %v1703, 2147483648
          %v1708 = vmul.f32 %v1707, 1.442695
          %v1709 = vpow.pop %v1708
          %v1710 = vadd.f32 %v1709, 1.0
          %v1711 = vrcp.pop %v1710
          %v1712 = vmul.f32 %v1710, %v1711
          %v1713 = vsub.f32 1.0, %v1712
          %v1714 = vmul.f32 %v1711, %v1713
          %v1715 = vadd.f32 %v1711, %v1714
          %vm1716 = vweird.f32 %v1710
          %vm1717 = vweird.f32 %v1711
          %vm1718 = vmor %vm1716, %vm1717
          %v1719 = vsel %vm1718, %v1711, %v1715
          %v1720 = vand.u32 2147483647, %v1710
          %vm1721 = vcmp.eq.f32.partialorder %v1720, 8.507059e+37
          %v1722 = vand.u32 %v1710, 2147483648
          %v1723 = vor.u32 1.1754944e-38, %v1722
          %v1724 = vsel %vm1721, %v1723, %v1719
          %v1725 = vmul.f32 1.0, %v1724
          %v1726 = vxor.u32 %v1704, 2147483648
          %v1727 = vmul.f32 %v1726, 1.442695
          %v1728 = vpow.pop %v1727
          %v1729 = vadd.f32 %v1728, 1.0
          %v1730 = vrcp.pop %v1729
          %v1731 = vmul.f32 %v1729, %v1730
          %v1732 = vsub.f32 1.0, %v1731
          %v1733 = vmul.f32 %v1730, %v1732
          %v1734 = vadd.f32 %v1730, %v1733
          %vm1735 = vweird.f32 %v1729
          %vm1736 = vweird.f32 %v1730
          %vm1737 = vmor %vm1735, %vm1736
          %v1738 = vsel %vm1737, %v1730, %v1734
          %v1739 = vand.u32 2147483647, %v1729
          %vm1740 = vcmp.eq.f32.partialorder %v1739, 8.507059e+37
          %v1741 = vand.u32 %v1729, 2147483648
          %v1742 = vor.u32 1.1754944e-38, %v1741
          %v1743 = vsel %vm1740, %v1742, %v1738
          %v1744 = vmul.f32 1.0, %v1743
          %v1745 = vtanh.pop %v1705
          %v1746 = vxor.u32 %v1706, 2147483648
          %v1747 = vmul.f32 %v1746, 1.442695
          %v1748 = vpow.pop %v1747
          %v1749 = vadd.f32 %v1748, 1.0
          %v1750 = vrcp.pop %v1749
          %v1751 = vmul.f32 %v1749, %v1750
          %v1752 = vsub.f32 1.0, %v1751
          %v1753 = vmul.f32 %v1750, %v1752
          %v1754 = vadd.f32 %v1750, %v1753
          %vm1755 = vweird.f32 %v1749
          %vm1756 = vweird.f32 %v1750
          %vm1757 = vmor %vm1755, %vm1756
          %v1758 = vsel %vm1757, %v1750, %v1754
          %v1759 = vand.u32 2147483647, %v1749
          %vm1760 = vcmp.eq.f32.partialorder %v1759, 8.507059e+37
          %v1761 = vand.u32 %v1749, 2147483648
          %v1762 = vor.u32 1.1754944e-38, %v1761
          %v1763 = vsel %vm1760, %v1762, %v1758
          %v1764 = vmul.f32 1.0, %v1763
          %v1765 = vmul.f32 %v1744, %v1618
          %v1766 = vmul.f32 %v1725, %v1745
          %v1767 = vadd.f32 %v1765, %v1766
          %v1768 = vtanh.pop %v1767
          %v1769 = vmul.f32 %v1764, %v1768
          %s1770 = scalar_lea.vmem [#allocation2], 48
          %1771 = vst [vmem:[%s1770] sm:$0xff] %v1769
          %1772 = vmatpush.msra.mxu0 %v724
          %1773 = vmatpush.msra.mxu0 %v720
          %1774 = vmatpush.msra.mxu0 %v716
          %1775 = vmatpush.msra.mxu0 %v712
          %1776 = vmatpush.msra.mxu0 %v708
          %1777 = vmatpush.msra.mxu0 %v704
          %1778 = vmatpush.msra.mxu0 %v700
          %1779 = vmatpush.msra.mxu0 %v696
          %1780 = vmatpush.msra.mxu0 %v692
          %1781 = vmatpush.msra.mxu0 %v688
          %1782 = vmatpush.msra.mxu0 %v684
          %1783 = vmatpush.msra.mxu0 %v680
          %1784 = vmatpush.msra.mxu0 %v676
          %1785 = vmatpush.msra.mxu0 %v672
          %1786 = vmatpush.msra.mxu0 %v668
          %1787 = vmatpush.msra.mxu0 %v664
          %1788 = vmatmul.f32.gmra.mxu0 %v1769
          %v1789 = vpop.f32.mrf.mxu0
          %v1790 = vadd.f32 0.0, %v1789
          %1791 = vdwg.mxu0
          %1792 = vmatpush.msra.mxu0 %v725
          %1793 = vmatpush.msra.mxu0 %v721
          %1794 = vmatpush.msra.mxu0 %v717
          %1795 = vmatpush.msra.mxu0 %v713
          %1796 = vmatpush.msra.mxu0 %v709
          %1797 = vmatpush.msra.mxu0 %v705
          %1798 = vmatpush.msra.mxu0 %v701
          %1799 = vmatpush.msra.mxu0 %v697
          %1800 = vmatpush.msra.mxu0 %v693
          %1801 = vmatpush.msra.mxu0 %v689
          %1802 = vmatpush.msra.mxu0 %v685
          %1803 = vmatpush.msra.mxu0 %v681
          %1804 = vmatpush.msra.mxu0 %v677
          %1805 = vmatpush.msra.mxu0 %v673
          %1806 = vmatpush.msra.mxu0 %v669
          %1807 = vmatpush.msra.mxu0 %v665
          %1808 = vmatmul.f32.gmra.mxu0 %v1769
          %v1809 = vpop.f32.mrf.mxu0
          %v1810 = vadd.f32 0.0, %v1809
          %1811 = vdwg.mxu0
          %1812 = vmatpush.msra.mxu0 %v726
          %1813 = vmatpush.msra.mxu0 %v722
          %1814 = vmatpush.msra.mxu0 %v718
          %1815 = vmatpush.msra.mxu0 %v714
          %1816 = vmatpush.msra.mxu0 %v710
          %1817 = vmatpush.msra.mxu0 %v706
          %1818 = vmatpush.msra.mxu0 %v702
          %1819 = vmatpush.msra.mxu0 %v698
          %1820 = vmatpush.msra.mxu0 %v694
          %1821 = vmatpush.msra.mxu0 %v690
          %1822 = vmatpush.msra.mxu0 %v686
          %1823 = vmatpush.msra.mxu0 %v682
          %1824 = vmatpush.msra.mxu0 %v678
          %1825 = vmatpush.msra.mxu0 %v674
          %1826 = vmatpush.msra.mxu0 %v670
          %1827 = vmatpush.msra.mxu0 %v666
          %1828 = vmatmul.f32.gmra.mxu0 %v1769
          %v1829 = vpop.f32.mrf.mxu0
          %v1830 = vadd.f32 0.0, %v1829
          %1831 = vdwg.mxu0
          %1832 = vmatpush.msra.mxu0 %v727
          %1833 = vmatpush.msra.mxu0 %v723
          %1834 = vmatpush.msra.mxu0 %v719
          %1835 = vmatpush.msra.mxu0 %v715
          %1836 = vmatpush.msra.mxu0 %v711
          %1837 = vmatpush.msra.mxu0 %v707
          %1838 = vmatpush.msra.mxu0 %v703
          %1839 = vmatpush.msra.mxu0 %v699
          %1840 = vmatpush.msra.mxu0 %v695
          %1841 = vmatpush.msra.mxu0 %v691
          %1842 = vmatpush.msra.mxu0 %v687
          %1843 = vmatpush.msra.mxu0 %v683
          %1844 = vmatpush.msra.mxu0 %v679
          %1845 = vmatpush.msra.mxu0 %v675
          %1846 = vmatpush.msra.mxu0 %v671
          %1847 = vmatpush.msra.mxu0 %v667
          %1848 = vmatmul.f32.gmra.mxu0 %v1769
          %v1849 = vpop.f32.mrf.mxu0
          %v1850 = vadd.f32 0.0, %v1849
          %1851 = vdwg.mxu0
          %v1852 = vadd.f32 %v539, %v1790
          %v1853 = vadd.f32 %v580, %v1810
          %v1854 = vadd.f32 %v621, %v1830
          %v1855 = vadd.f32 %v662, %v1850
          %v1856 = vxor.u32 %v1852, 2147483648
          %v1857 = vmul.f32 %v1856, 1.442695
          %v1858 = vpow.pop %v1857
          %v1859 = vadd.f32 %v1858, 1.0
          %v1860 = vrcp.pop %v1859
          %v1861 = vmul.f32 %v1859, %v1860
          %v1862 = vsub.f32 1.0, %v1861
          %v1863 = vmul.f32 %v1860, %v1862
          %v1864 = vadd.f32 %v1860, %v1863
          %vm1865 = vweird.f32 %v1859
          %vm1866 = vweird.f32 %v1860
          %vm1867 = vmor %vm1865, %vm1866
          %v1868 = vsel %vm1867, %v1860, %v1864
          %v1869 = vand.u32 2147483647, %v1859
          %vm1870 = vcmp.eq.f32.partialorder %v1869, 8.507059e+37
          %v1871 = vand.u32 %v1859, 2147483648
          %v1872 = vor.u32 1.1754944e-38, %v1871
          %v1873 = vsel %vm1870, %v1872, %v1868
          %v1874 = vmul.f32 1.0, %v1873
          %v1875 = vxor.u32 %v1853, 2147483648
          %v1876 = vmul.f32 %v1875, 1.442695
          %v1877 = vpow.pop %v1876
          %v1878 = vadd.f32 %v1877, 1.0
          %v1879 = vrcp.pop %v1878
          %v1880 = vmul.f32 %v1878, %v1879
          %v1881 = vsub.f32 1.0, %v1880
          %v1882 = vmul.f32 %v1879, %v1881
          %v1883 = vadd.f32 %v1879, %v1882
          %vm1884 = vweird.f32 %v1878
          %vm1885 = vweird.f32 %v1879
          %vm1886 = vmor %vm1884, %vm1885
          %v1887 = vsel %vm1886, %v1879, %v1883
          %v1888 = vand.u32 2147483647, %v1878
          %vm1889 = vcmp.eq.f32.partialorder %v1888, 8.507059e+37
          %v1890 = vand.u32 %v1878, 2147483648
          %v1891 = vor.u32 1.1754944e-38, %v1890
          %v1892 = vsel %vm1889, %v1891, %v1887
          %v1893 = vmul.f32 1.0, %v1892
          %v1894 = vtanh.pop %v1854
          %v1895 = vxor.u32 %v1855, 2147483648
          %v1896 = vmul.f32 %v1895, 1.442695
          %v1897 = vpow.pop %v1896
          %v1898 = vadd.f32 %v1897, 1.0
          %v1899 = vrcp.pop %v1898
          %v1900 = vmul.f32 %v1898, %v1899
          %v1901 = vsub.f32 1.0, %v1900
          %v1902 = vmul.f32 %v1899, %v1901
          %v1903 = vadd.f32 %v1899, %v1902
          %vm1904 = vweird.f32 %v1898
          %vm1905 = vweird.f32 %v1899
          %vm1906 = vmor %vm1904, %vm1905
          %v1907 = vsel %vm1906, %v1899, %v1903
          %v1908 = vand.u32 2147483647, %v1898
          %vm1909 = vcmp.eq.f32.partialorder %v1908, 8.507059e+37
          %v1910 = vand.u32 %v1898, 2147483648
          %v1911 = vor.u32 1.1754944e-38, %v1910
          %v1912 = vsel %vm1909, %v1911, %v1907
          %v1913 = vmul.f32 1.0, %v1912
          %v1914 = vmul.f32 %v1893, %v1767
          %v1915 = vmul.f32 %v1874, %v1894
          %v1916 = vadd.f32 %v1914, %v1915
          %v1917 = vtanh.pop %v1916
          %v1918 = vmul.f32 %v1913, %v1917
          %s1919 = scalar_lea.vmem [#allocation2], 56
          %1920 = vst [vmem:[%s1919] sm:$0xff] %v1918
          %1921 = vst [vmem:[#allocation9] sm:$0xff] %v1918
          %1922 = vst [vmem:[#allocation11] sm:$0xff] %v1916
        $region68: #{tpu_custom_call.1} parent=51 // pred_fallthru
          _
        %v1923 = vld [vmem:[#allocation2] sm:$0xff]
        %v1924 = vld [vmem:[#allocation2 + $0x8] sm:$0xff]
        %v1925 = vld [vmem:[#allocation2 + $0x10] sm:$0xff]
        %v1926 = vld [vmem:[#allocation2 + $0x18] sm:$0xff]
        %v1927 = vld [vmem:[#allocation2 + $0x20] sm:$0xff]
        %v1928 = vld [vmem:[#allocation2 + $0x28] sm:$0xff]
        %v1929 = vld [vmem:[#allocation2 + $0x30] sm:$0xff]
        %v1930 = vld [vmem:[#allocation2 + $0x38] sm:$0xff]
        %v1931 = vld [vmem:[%s431] sm:$0xff]
        %v1932 = vld [vmem:[%s431 + $0x8] sm:$0xff]
        %v1933 = vld [vmem:[%s431 + $0x10] sm:$0xff]
        %v1934 = vld [vmem:[%s431 + $0x18] sm:$0xff]
        %v1935 = vld [vmem:[%s431 + $0x20] sm:$0xff]
        %v1936 = vld [vmem:[%s431 + $0x28] sm:$0xff]
        %v1937 = vld [vmem:[%s431 + $0x30] sm:$0xff]
        %v1938 = vld [vmem:[%s431 + $0x38] sm:$0xff]
        %v1939 = vld [vmem:[%s431 + $0x40] sm:$0xff]
        %v1940 = vld [vmem:[%s431 + $0x48] sm:$0xff]
        %v1941 = vld [vmem:[%s431 + $0x50] sm:$0xff]
        %v1942 = vld [vmem:[%s431 + $0x58] sm:$0xff]
        %v1943 = vld [vmem:[%s431 + $0x60] sm:$0xff]
        %v1944 = vld [vmem:[%s431 + $0x68] sm:$0xff]
        %v1945 = vld [vmem:[%s431 + $0x70] sm:$0xff]
        %v1946 = vld [vmem:[%s431 + $0x78] sm:$0xff]
        %v1947 = vld [vmem:[%s434] sm:$0x1]
        %v1949 = vperm.slane %v1947, 0
        %1951 = vmatpush.msra.mxu0 %v1946
        %1952 = vmatpush.msra.mxu0 %v1945
        %1953 = vmatpush.msra.mxu0 %v1944
        %1954 = vmatpush.msra.mxu0 %v1943
        %1955 = vmatpush.msra.mxu0 %v1942
        %1956 = vmatpush.msra.mxu0 %v1941
        %1957 = vmatpush.msra.mxu0 %v1940
        %1958 = vmatpush.msra.mxu0 %v1939
        %1959 = vmatpush.msra.mxu0 %v1938
        %1960 = vmatpush.msra.mxu0 %v1937
        %1961 = vmatpush.msra.mxu0 %v1936
        %1962 = vmatpush.msra.mxu0 %v1935
        %1963 = vmatpush.msra.mxu0 %v1934
        %1964 = vmatpush.msra.mxu0 %v1933
        %1965 = vmatpush.msra.mxu0 %v1932
        %1966 = vmatpush.msra.mxu0 %v1931
        %1967 = vmatmul.f32.gmra.mxu0 %v1923
        %v1968 = vpop.f32.mrf.mxu0
        %v1969 = vadd.f32 %v1949, %v1968
        %1970 = vmatmul.f32.gmra.mxu0 %v1924
        %v1971 = vpop.f32.mrf.mxu0
        %v1972 = vadd.f32 %v1949, %v1971
        %1973 = vmatmul.f32.gmra.mxu0 %v1925
        %v1974 = vpop.f32.mrf.mxu0
        %v1975 = vadd.f32 %v1949, %v1974
        %1976 = vmatmul.f32.gmra.mxu0 %v1926
        %v1977 = vpop.f32.mrf.mxu0
        %v1978 = vadd.f32 %v1949, %v1977
        %1979 = vmatmul.f32.gmra.mxu0 %v1927
        %v1980 = vpop.f32.mrf.mxu0
        %v1981 = vadd.f32 %v1949, %v1980
        %1982 = vmatmul.f32.gmra.mxu0 %v1928
        %v1983 = vpop.f32.mrf.mxu0
        %v1984 = vadd.f32 %v1949, %v1983
        %1985 = vmatmul.f32.gmra.mxu0 %v1929
        %v1986 = vpop.f32.mrf.mxu0
        %v1987 = vadd.f32 %v1949, %v1986
        %1988 = vmatmul.f32.gmra.mxu0 %v1930
        %v1989 = vpop.f32.mrf.mxu0
        %v1990 = vadd.f32 %v1949, %v1989
        %1991 = vdwg.mxu0
        %1992 = vst [vmem:[%s417] sm:$0xff] %v1969
        %1993 = vst [vmem:[%s417 + $0x8] sm:$0xff] %v1972
        %1994 = vst [vmem:[%s417 + $0x10] sm:$0xff] %v1975
        %1995 = vst [vmem:[%s417 + $0x18] sm:$0xff] %v1978
        %1996 = vst [vmem:[%s417 + $0x20] sm:$0xff] %v1981
        %1997 = vst [vmem:[%s417 + $0x28] sm:$0xff] %v1984
        %1998 = vst [vmem:[%s417 + $0x30] sm:$0xff] %v1987
        %1999 = vst [vmem:[%s417 + $0x38] sm:$0xff] %v1990
        %s2000 = sand.u32 %s233, 1
        %s2001 = scalar_lea.sflag [#allocation5], %s2000
        %s2002 = sand.u32 %s233, 1
        %s2003 = smul.addr %s2002, 64
        %s2004 = scalar_lea.vmem [#allocation8], %s2003
        // Predicated region
        $region69: #{tpu_custom_call.1} parent=51 // pred_check
          %p2005 = pneg %p243
        $region70: #{tpu_custom_call.1} parent=51 // pred_check_branch
          %2007 = sbr.rel (%p2005) target = $region72
        $region71: #{tpu_custom_call.1} parent=51 // pred_region
          %s2008 = smul.u32 8, %s32
          %2010 = vsyncadd %s2001, 0
          %s2011 = sadd.s32 %s33, %s2008
          %s2012 = smul.addr %s2011, 8
          %s2013 = scalar_lea.hbm %s8, %s2012
          %s2014 = sshll.u32 %s2004, 4
          %s2015 = int_to_ptr.vmem [resolvable:$true] %s2014
          %s2016 = sshll.u32 %s2013, 4
          %s2017 = int_to_ptr.hbm [resolvable:$true] %s2016
          %2022 = dma.vmem_to_hbm [thread:$0]  %s2015, 1024, %s2017, %s2001, 128, 128, 8
        $region72: #{tpu_custom_call.1} parent=51 // pred_fallthru
          _
        // Predicated region
        $region73: #{tpu_custom_call.1} parent=51 // pred_check
          %p2023 = pneg %p264
        $region74: #{tpu_custom_call.1} parent=51 // pred_check_branch
          %2025 = sbr.rel (%p2023) target = $region76
        $region75: #{tpu_custom_call.1} parent=51 // pred_region
          %2027 = vsyncadd [#allocation10], 0
          %s2029 = sshll.u32 [#allocation9], 4
          %s2030 = int_to_ptr.vmem [resolvable:$true] %s2029
          %s2031 = sshll.u32 %s9, 4
          %s2032 = int_to_ptr.hbm [resolvable:$true] %s2031
          %2034 = dma.vmem_to_hbm [thread:$0]  %s2030, 128, %s2032, [#allocation10]
        $region76: #{tpu_custom_call.1} parent=51 // pred_fallthru
          _
        // Predicated region
        $region77: #{tpu_custom_call.1} parent=51 // pred_check
          %p2035 = pneg %p285
        $region78: #{tpu_custom_call.1} parent=51 // pred_check_branch
          %2037 = sbr.rel (%p2035) target = $region80
        $region79: #{tpu_custom_call.1} parent=51 // pred_region
          %2039 = vsyncadd [#allocation10], 0
          %s2041 = sshll.u32 [#allocation11], 4
          %s2042 = int_to_ptr.vmem [resolvable:$true] %s2041
          %s2043 = sshll.u32 %s10, 4
          %s2044 = int_to_ptr.hbm [resolvable:$true] %s2043
          %2046 = dma.vmem_to_hbm [thread:$0]  %s2042, 128, %s2044, [#allocation10]
        $region80: #{tpu_custom_call.1} parent=51 // pred_fallthru
          _
        // Predicated region
        $region81: #{tpu_custom_call.1} parent=51 // pred_check
          %p2047 = pneg %p264
        $region82: #{tpu_custom_call.1} parent=51 // pred_check_branch
          %2049 = sbr.rel (%p2047) target = $region84
        $region83: #{tpu_custom_call.1} parent=51 // pred_region
          %2051 = dma.done [#allocation10], 128
        $region84: #{tpu_custom_call.1} parent=51 // pred_fallthru
          _
        // Predicated region
        $region85: #{tpu_custom_call.1} parent=51 // pred_check
          %p2052 = pneg %p285
        $region86: #{tpu_custom_call.1} parent=51 // pred_check_branch
          %2054 = sbr.rel (%p2052) target = $region88
        $region87: #{tpu_custom_call.1} parent=51 // pred_region
          %2056 = dma.done [#allocation10], 128
        $region88: #{tpu_custom_call.1} parent=51 // pred_fallthru
          _
      $region52: #{tpu_custom_call.1} parent=5 // pred_fallthru
        _
      %p2057 = scmp.le.s32.totalorder 2, %s23
      // Predicated region
      $region89: #{tpu_custom_call.1} parent=5 // pred_check
        %p2058 = pneg %p2057
      $region90: #{tpu_custom_call.1} parent=5 // pred_check_branch
        %2060 = sbr.rel (%p2058) target = $region92
      $region91: #{tpu_custom_call.1} parent=5 // pred_region
        %s2061 = ssub.s32 %s23, 2
        // Predicated region
        $region93: #{tpu_custom_call.1} parent=91 // pred_check
          %p2062 = pneg %p249
        $region94: #{tpu_custom_call.1} parent=91 // pred_check_branch
          %2064 = sbr.rel (%p2062) target = $region96
        $region95: #{tpu_custom_call.1} parent=91 // pred_region
          %s2065 = sand.u32 %s234, 1
          %s2066 = scalar_lea.sflag [#allocation5], %s2065
          %s2067 = sand.u32 %s234, 1
          %s2068 = smul.addr %s2067, 64
          %s2069 = scalar_lea.vmem [#allocation8], %s2068
          %2071 = dma.done %s2066, 1024
        $region96: #{tpu_custom_call.1} parent=91 // pred_fallthru
          _
      $region92: #{tpu_custom_call.1} parent=5 // pred_fallthru
        _
    $region6: #{tpu_custom_call.1} parent=1 // loop_footer
      %s27 = sadd.s32 1, %s23
    $region7: #{tpu_custom_call.1} parent=1 // loop_footer_branch
      %22 = sbr.rel target = $region3
    $region8: #{tpu_custom_call.1} parent=1 // loop_exit
      _
    %2072 = vsyncpa [#allocation4], 1
    %s2073 = scalar_lea.sflag [#allocation4], 1
    %2074 = vsyncpa %s2073, 1
    %2075 = vsyncpa [#allocation7], 1
    %2076 = vsyncpa [#allocation5], 1
    %s2077 = scalar_lea.sflag [#allocation5], 1
    %2078 = vsyncpa %s2077, 1
    %2079 = vsyncpa [#allocation10], 1

</llo_original>
